<compile_context>
chip_gen: v7x
topology: tpu7x:2x2x1
jax: 0.10.0
libtpu: 0.0.40
codegen_flags: <defaults>
</compile_context>

<pallas_src>
import math
import functools

import jax
import jax.numpy as jnp
import numpy as np
from jax import lax
from jax.experimental import pallas as pl
from jax.experimental.pallas import tpu as pltpu


# ----------------------------------------------------------------------------
# Kernel 1: fused QKV projection (+ scale on q), head-major output layout
# ----------------------------------------------------------------------------

def qkv_proj_kernel(x_ref, w_ref, b_ref, q_ref, k_ref, v_ref, *, n_head, scale):
    """x tile (TQ, C) -> q,k,v tiles (n_head, TQ, hd); q pre-scaled by 1/sqrt(hd)."""
    x = x_ref[...].astype(jnp.bfloat16)                       # (TQ, C)
    tq, C = x.shape
    hd = C // n_head
    # One wide MXU matmul for q, k and v together (contraction C, output 3C).
    qkv = jnp.dot(x, w_ref[...], preferred_element_type=jnp.float32) + b_ref[...]
    # One-time head-major relayout (the 64-wide lane slices happen only here,
    # once per element, so the attention kernel works on (n_head, T, hd) batches).
    for h in range(n_head):
        q_ref[h] = (qkv[:, h * hd:(h + 1) * hd] * scale).astype(q_ref.dtype)
        k_ref[h] = qkv[:, C + h * hd:C + (h + 1) * hd].astype(k_ref.dtype)
        v_ref[h] = qkv[:, 2 * C + h * hd:2 * C + (h + 1) * hd].astype(v_ref.dtype)


# ----------------------------------------------------------------------------
# Kernel 2: flash-style causal attention + fused output projection
# ----------------------------------------------------------------------------

def flash_attn_kernel(q_ref, k_ref, v_ref, wo_ref, bo_ref, o_ref,
                      m_sc, l_sc, acc_sc, *, tq, tk):
    qi = pl.program_id(1)
    ki = pl.program_id(2)
    q_start = qi * tq
    k_start = ki * tk

    @pl.when(ki == 0)
    def _init():
        m_sc[...] = jnp.full_like(m_sc, -jnp.inf)
        l_sc[...] = jnp.zeros_like(l_sc)
        acc_sc[...] = jnp.zeros_like(acc_sc)

    def process(apply_mask):
        q = q_ref[...]                                        # (nh, tq, hd) bf16, pre-scaled
        k = k_ref[...]                                        # (nh, tk, hd) bf16
        v = v_ref[...]                                        # (nh, tk, hd) bf16
        # Batched over heads: no per-head Python loop, no concatenate.
        s = jnp.einsum('hqd,hkd->hqk', q, k,
                       preferred_element_type=jnp.float32)    # (nh, tq, tk) f32
        if apply_mask:
            row = q_start + lax.broadcasted_iota(jnp.int32, (tq, tk), 0)
            col = k_start + lax.broadcasted_iota(jnp.int32, (tq, tk), 1)
            s = jnp.where((col <= row)[None, :, :], s, -jnp.inf)
        m_prev = m_sc[...]
        m_new = jnp.maximum(m_prev, s.max(axis=-1, keepdims=True))
        alpha = jnp.exp(m_prev - m_new)
        p = jnp.exp(s - m_new)
        l_sc[...] = alpha * l_sc[...] + p.sum(axis=-1, keepdims=True)
        acc_sc[...] = alpha * acc_sc[...] + jnp.einsum(
            'hqk,hkd->hqd', p.astype(v.dtype), v,
            preferred_element_type=jnp.float32)
        m_sc[...] = m_new

    # KV block entirely at/below the diagonal: no mask work at all.
    @pl.when(k_start + tk - 1 <= q_start)
    def _unmasked():
        process(apply_mask=False)

    # KV block straddling the diagonal: apply the triangular mask.
    @pl.when(jnp.logical_and(k_start + tk - 1 > q_start,
                             k_start <= q_start + tq - 1))
    def _masked():
        process(apply_mask=True)

    # KV blocks fully above the diagonal are skipped entirely (no branch runs).

    @pl.when(ki == pl.num_programs(2) - 1)
    def _finalize():
        inv_l = pl.reciprocal(l_sc[...], approx=True)         # EUP slot, ~free
        out_h = (acc_sc[...] * inv_l).astype(wo_ref.dtype)    # (nh, tq, hd) bf16
        # Output projection accumulated over heads: sum_h out_h @ Wo[h]
        y = jnp.einsum('hqd,hdc->hqc', out_h, wo_ref[...],
                       preferred_element_type=jnp.float32).sum(axis=0)  # (tq, C)
        o_ref[...] = (y + bo_ref[...]).astype(o_ref.dtype)


# ----------------------------------------------------------------------------
# Wrapper
# ----------------------------------------------------------------------------

def causal_self_attention(x, w_qkv, b_qkv, w_o, b_o, *, n_head, tq=128, tk=128):
    """x: (B, T, C) f32. Weights pre-transposed to (in, out)."""
    B, T, C = x.shape
    assert C % n_head == 0
    hd = C // n_head
    tq = min(tq, T)
    tk = min(tk, T)
    assert T % tq == 0 and T % tk == 0
    scale = 1.0 / math.sqrt(hd)

    # bf16 matmul operands (accumulation stays f32 inside the kernels).
    w_qkv_bf = w_qkv.astype(jnp.bfloat16)                     # (C, 3C)
    w_o_bf = w_o.reshape(n_head, hd, C).astype(jnp.bfloat16)  # (nh, hd, C)
    b_qkv_f = b_qkv.reshape(1, 3 * C).astype(jnp.float32)
    b_o_f = b_o.reshape(1, C).astype(jnp.float32)

    # Above the default scoped cap, below v7x's 64 MiB physical VMEM.
    vmem_limit = 48 * 1024 * 1024

    # --- QKV projection ------------------------------------------------------
    nT = T // tq
    qkv_shape = jax.ShapeDtypeStruct((B, n_head, T, hd), jnp.bfloat16)
    q, k, v = pl.pallas_call(
        functools.partial(qkv_proj_kernel, n_head=n_head, scale=scale),
        out_shape=(qkv_shape, qkv_shape, qkv_shape),
        grid_spec=pltpu.PrefetchScalarGridSpec(
            num_scalar_prefetch=0,
            grid=(B, nT),
            in_specs=[
                pl.BlockSpec((pl.Squeezed(), tq, C), lambda b, i: (b, i, 0)),
                pl.BlockSpec((C, 3 * C), lambda b, i: (0, 0)),
                pl.BlockSpec((1, 3 * C), lambda b, i: (0, 0)),
            ],
            out_specs=[
                pl.BlockSpec((pl.Squeezed(), n_head, tq, hd),
                             lambda b, i: (b, 0, i, 0)),
            ] * 3,
        ),
        compiler_params=pltpu.CompilerParams(
            dimension_semantics=("parallel", "parallel"),
            vmem_limit_bytes=vmem_limit),
    )(x, w_qkv_bf, b_qkv_f)

    # --- flash attention + output projection ---------------------------------
    nQ, nK = T // tq, T // tk
    y = pl.pallas_call(
        functools.partial(flash_attn_kernel, tq=tq, tk=tk),
        out_shape=jax.ShapeDtypeStruct((B, T, C), x.dtype),
        grid_spec=pltpu.PrefetchScalarGridSpec(
            num_scalar_prefetch=0,
            grid=(B, nQ, nK),
            in_specs=[
                pl.BlockSpec((pl.Squeezed(), n_head, tq, hd),
                             lambda b, qi, ki: (b, 0, qi, 0)),
                pl.BlockSpec((pl.Squeezed(), n_head, tk, hd),
                             lambda b, qi, ki: (b, 0, ki, 0)),
                pl.BlockSpec((pl.Squeezed(), n_head, tk, hd),
                             lambda b, qi, ki: (b, 0, ki, 0)),
                pl.BlockSpec((n_head, hd, C), lambda b, qi, ki: (0, 0, 0)),
                pl.BlockSpec((1, C), lambda b, qi, ki: (0, 0)),
            ],
            out_specs=pl.BlockSpec((pl.Squeezed(), tq, C),
                                   lambda b, qi, ki: (b, qi, 0)),
            scratch_shapes=[
                pltpu.VMEM((n_head, tq, 1), jnp.float32),    # running max  m
                pltpu.VMEM((n_head, tq, 1), jnp.float32),    # running sum  l
                pltpu.VMEM((n_head, tq, hd), jnp.float32),   # running acc
            ],
        ),
        compiler_params=pltpu.CompilerParams(
            dimension_semantics=("parallel", "parallel", "arbitrary"),
            vmem_limit_bytes=vmem_limit),
    )(q, k, v, w_o_bf, b_o_f)
    return y


# ----------------------------------------------------------------------------
# Pure-JAX reference (mirrors the PyTorch module, dropout = 0 / eval mode)
# ----------------------------------------------------------------------------

def ref_attention(x, w_qkv, b_qkv, w_o, b_o, n_head):
    B, T, C = x.shape
    hd = C // n_head
    qkv = x @ w_qkv + b_qkv
    q, k, v = jnp.split(qkv, 3, axis=-1)
    q = q.reshape(B, T, n_head, hd).transpose(0, 2, 1, 3)
    k = k.reshape(B, T, n_head, hd).transpose(0, 2, 1, 3)
    v = v.reshape(B, T, n_head, hd).transpose(0, 2, 1, 3)
    att = jnp.einsum("bhtd,bhsd->bhts", q, k) * (1.0 / math.sqrt(hd))
    mask = jnp.tril(jnp.ones((T, T), bool))
    att = jnp.where(mask, att, -jnp.inf)
    att = jax.nn.softmax(att, axis=-1)
    y = jnp.einsum("bhts,bhsd->bhtd", att, v)
    y = y.transpose(0, 2, 1, 3).reshape(B, T, C)
    return y @ w_o + b_o


# ----------------------------------------------------------------------------

if __name__ == "__main__":
    B, T, C, n_head = 2, 256, 128, 2        # small but exercises the Q/KV tiling

    key = jax.random.PRNGKey(0)
    kx, kw1, kw2, kb1, kb2 = jax.random.split(key, 5)
    x = jax.random.normal(kx, (B, T, C), jnp.float32)
    # Linear weights stored pre-transposed to (in, out); PyTorch is x @ W.T + b.
    w_qkv = 0.02 * jax.random.normal(kw1, (C, 3 * C), jnp.float32)
    b_qkv = 0.01 * jax.random.normal(kb1, (3 * C,), jnp.float32)
    w_o = 0.02 * jax.random.normal(kw2, (C, C), jnp.float32)
    b_o = 0.01 * jax.random.normal(kb2, (C,), jnp.float32)

    # Round weights to bf16 once so kernel and reference share identical values;
    # the remaining difference is bf16 activation rounding + approx reciprocal.
    w_qkv = w_qkv.astype(jnp.bfloat16).astype(jnp.float32)
    w_o = w_o.astype(jnp.bfloat16).astype(jnp.float32)

    y = causal_self_attention(x, w_qkv, b_qkv, w_o, b_o,
                              n_head=n_head, tq=128, tk=128)
    y = jax.block_until_ready(y)
    assert y.shape == (B, T, C)

    y_ref = ref_attention(x, w_qkv, b_qkv, w_o, b_o, n_head)
    np.testing.assert_allclose(np.asarray(y), np.asarray(y_ref),
                               rtol=2e-2, atol=5e-3)

    print("KERNEL_OK")
</pallas_src>

<mosaic_0001>
module attributes {stable_mosaic.version = 11 : i64} {
  func.func @qkv_proj_kernel(%arg0: i32, %arg1: i32, %arg2: memref<1x128x128xf32, #tpu.memory_space<vmem>>, %arg3: memref<128x384xbf16, #tpu.memory_space<vmem>>, %arg4: memref<1x384xf32, #tpu.memory_space<vmem>>, %arg5: memref<1x2x128x64xbf16, #tpu.memory_space<vmem>>, %arg6: memref<1x2x128x64xbf16, #tpu.memory_space<vmem>>, %arg7: memref<1x2x128x64xbf16, #tpu.memory_space<vmem>>) attributes {dimension_semantics = [#tpu.dimension_semantics<parallel>, #tpu.dimension_semantics<parallel>], iteration_bounds = array<i64: 2, 2>, scalar_prefetch = 0 : i64, scratch_operands = 0 : i64, tpu.core_type = #tpu.core_type<tc>, window_params = [{transform_indices = @transform_0, window_bounds = array<i64: 1, 128, 128>}, {pipeline_mode = #tpu.pipeline_mode<synchronous>, transform_indices = @transform_1, window_bounds = array<i64: 128, 384>}, {pipeline_mode = #tpu.pipeline_mode<synchronous>, transform_indices = @transform_2, window_bounds = array<i64: 1, 384>}, {transform_indices = @transform_3, window_bounds = array<i64: 1, 2, 128, 64>}, {transform_indices = @transform_4, window_bounds = array<i64: 1, 2, 128, 64>}, {transform_indices = @transform_5, window_bounds = array<i64: 1, 2, 128, 64>}]} {
    %c0 = arith.constant 0 : index
    %c0_0 = arith.constant 0 : index
    %c0_1 = arith.constant 0 : index
    %0 = vector.load %arg2[%c0, %c0_0, %c0_1] : memref<1x128x128xf32, #tpu.memory_space<vmem>>, vector<1x128x128xf32>
    %1 = vector.shape_cast %0 : vector<1x128x128xf32> to vector<128x128xf32>
    %2 = arith.truncf %1 : vector<128x128xf32> to vector<128x128xbf16>
    %c0_2 = arith.constant 0 : index
    %c0_3 = arith.constant 0 : index
    %3 = vector.load %arg3[%c0_2, %c0_3] : memref<128x384xbf16, #tpu.memory_space<vmem>>, vector<128x384xbf16>
    %cst = arith.constant dense<0.000000e+00> : vector<128x384xf32>
    %4 = tpu.matmul %2, %3, %cst {dimension_numbers = #tpu.dot_dimension_numbers<[1], [0], [0], [1], [0, 0, 1, 1], [], []>} : vector<128x128xbf16>, vector<128x384xbf16>, vector<128x384xf32> -> vector<128x384xf32>
    %c0_4 = arith.constant 0 : index
    %c0_5 = arith.constant 0 : index
    %5 = vector.load %arg4[%c0_4, %c0_5] : memref<1x384xf32, #tpu.memory_space<vmem>>, vector<1x384xf32>
    %6 = vector.broadcast %5 : vector<1x384xf32> to vector<128x384xf32>
    %7 = arith.addf %4, %6 : vector<128x384xf32>
    %8 = vector.extract_strided_slice %7 {offsets = [0, 0], sizes = [128, 64], strides = [1, 1]} : vector<128x384xf32> to vector<128x64xf32>
    %cst_6 = arith.constant 1.250000e-01 : f32
    %9 = vector.broadcast %cst_6 : f32 to vector<128x64xf32>
    %10 = arith.mulf %8, %9 : vector<128x64xf32>
    %11 = arith.truncf %10 : vector<128x64xf32> to vector<128x64xbf16>
    %c0_7 = arith.constant 0 : index
    %c0_8 = arith.constant 0 : index
    %c0_9 = arith.constant 0 : index
    %c0_10 = arith.constant 0 : index
    %12 = vector.load %arg5[%c0_7, %c0_8, %c0_9, %c0_10] : memref<1x2x128x64xbf16, #tpu.memory_space<vmem>>, vector<1x1x128x64xbf16>
    %13 = vector.shape_cast %12 : vector<1x1x128x64xbf16> to vector<128x64xbf16>
    %14 = vector.shape_cast %11 : vector<128x64xbf16> to vector<1x1x128x64xbf16>
    tpu.vector_store %arg5[%c0_7, %c0_8, %c0_9, %c0_10], %14 {strides = array<i32>} : memref<1x2x128x64xbf16, #tpu.memory_space<vmem>>, vector<1x1x128x64xbf16>,
    %15 = vector.extract_strided_slice %7 {offsets = [0, 128], sizes = [128, 64], strides = [1, 1]} : vector<128x384xf32> to vector<128x64xf32>
    %16 = arith.truncf %15 : vector<128x64xf32> to vector<128x64xbf16>
    %c0_11 = arith.constant 0 : index
    %c0_12 = arith.constant 0 : index
    %c0_13 = arith.constant 0 : index
    %c0_14 = arith.constant 0 : index
    %17 = vector.load %arg6[%c0_11, %c0_12, %c0_13, %c0_14] : memref<1x2x128x64xbf16, #tpu.memory_space<vmem>>, vector<1x1x128x64xbf16>
    %18 = vector.shape_cast %17 : vector<1x1x128x64xbf16> to vector<128x64xbf16>
    %19 = vector.shape_cast %16 : vector<128x64xbf16> to vector<1x1x128x64xbf16>
    tpu.vector_store %arg6[%c0_11, %c0_12, %c0_13, %c0_14], %19 {strides = array<i32>} : memref<1x2x128x64xbf16, #tpu.memory_space<vmem>>, vector<1x1x128x64xbf16>,
    %20 = vector.extract_strided_slice %7 {offsets = [0, 256], sizes = [128, 64], strides = [1, 1]} : vector<128x384xf32> to vector<128x64xf32>
    %21 = arith.truncf %20 : vector<128x64xf32> to vector<128x64xbf16>
    %c0_15 = arith.constant 0 : index
    %c0_16 = arith.constant 0 : index
    %c0_17 = arith.constant 0 : index
    %c0_18 = arith.constant 0 : index
    %22 = vector.load %arg7[%c0_15, %c0_16, %c0_17, %c0_18] : memref<1x2x128x64xbf16, #tpu.memory_space<vmem>>, vector<1x1x128x64xbf16>
    %23 = vector.shape_cast %22 : vector<1x1x128x64xbf16> to vector<128x64xbf16>
    %24 = vector.shape_cast %21 : vector<128x64xbf16> to vector<1x1x128x64xbf16>
    tpu.vector_store %arg7[%c0_15, %c0_16, %c0_17, %c0_18], %24 {strides = array<i32>} : memref<1x2x128x64xbf16, #tpu.memory_space<vmem>>, vector<1x1x128x64xbf16>,
    %25 = vector.extract_strided_slice %7 {offsets = [0, 64], sizes = [128, 64], strides = [1, 1]} : vector<128x384xf32> to vector<128x64xf32>
    %cst_19 = arith.constant 1.250000e-01 : f32
    %26 = vector.broadcast %cst_19 : f32 to vector<128x64xf32>
    %27 = arith.mulf %25, %26 : vector<128x64xf32>
    %28 = arith.truncf %27 : vector<128x64xf32> to vector<128x64xbf16>
    %c0_20 = arith.constant 0 : index
    %c1 = arith.constant 1 : index
    %c0_21 = arith.constant 0 : index
    %c0_22 = arith.constant 0 : index
    %29 = vector.load %arg5[%c0_20, %c1, %c0_21, %c0_22] : memref<1x2x128x64xbf16, #tpu.memory_space<vmem>>, vector<1x1x128x64xbf16>
    %30 = vector.shape_cast %29 : vector<1x1x128x64xbf16> to vector<128x64xbf16>
    %31 = vector.shape_cast %28 : vector<128x64xbf16> to vector<1x1x128x64xbf16>
    tpu.vector_store %arg5[%c0_20, %c1, %c0_21, %c0_22], %31 {strides = array<i32>} : memref<1x2x128x64xbf16, #tpu.memory_space<vmem>>, vector<1x1x128x64xbf16>,
    %32 = vector.extract_strided_slice %7 {offsets = [0, 192], sizes = [128, 64], strides = [1, 1]} : vector<128x384xf32> to vector<128x64xf32>
    %33 = arith.truncf %32 : vector<128x64xf32> to vector<128x64xbf16>
    %c0_23 = arith.constant 0 : index
    %c1_24 = arith.constant 1 : index
    %c0_25 = arith.constant 0 : index
    %c0_26 = arith.constant 0 : index
    %34 = vector.load %arg6[%c0_23, %c1_24, %c0_25, %c0_26] : memref<1x2x128x64xbf16, #tpu.memory_space<vmem>>, vector<1x1x128x64xbf16>
    %35 = vector.shape_cast %34 : vector<1x1x128x64xbf16> to vector<128x64xbf16>
    %36 = vector.shape_cast %33 : vector<128x64xbf16> to vector<1x1x128x64xbf16>
    tpu.vector_store %arg6[%c0_23, %c1_24, %c0_25, %c0_26], %36 {strides = array<i32>} : memref<1x2x128x64xbf16, #tpu.memory_space<vmem>>, vector<1x1x128x64xbf16>,
    %37 = vector.extract_strided_slice %7 {offsets = [0, 320], sizes = [128, 64], strides = [1, 1]} : vector<128x384xf32> to vector<128x64xf32>
    %38 = arith.truncf %37 : vector<128x64xf32> to vector<128x64xbf16>
    %c0_27 = arith.constant 0 : index
    %c1_28 = arith.constant 1 : index
    %c0_29 = arith.constant 0 : index
    %c0_30 = arith.constant 0 : index
    %39 = vector.load %arg7[%c0_27, %c1_28, %c0_29, %c0_30] : memref<1x2x128x64xbf16, #tpu.memory_space<vmem>>, vector<1x1x128x64xbf16>
    %40 = vector.shape_cast %39 : vector<1x1x128x64xbf16> to vector<128x64xbf16>
    %41 = vector.shape_cast %38 : vector<128x64xbf16> to vector<1x1x128x64xbf16>
    tpu.vector_store %arg7[%c0_27, %c1_28, %c0_29, %c0_30], %41 {strides = array<i32>} : memref<1x2x128x64xbf16, #tpu.memory_space<vmem>>, vector<1x1x128x64xbf16>,
    return
  }
  func.func @transform_0(%arg0: i32, %arg1: i32) -> (i32, i32, i32) {
    %c0_i32 = arith.constant 0 : i32
    %c0_i32_0 = arith.constant 0 : i32
    return %arg0, %arg1, %c0_i32 : i32, i32, i32
  }
  func.func @transform_1(%arg0: i32, %arg1: i32) -> (i32, i32) {
    %c0_i32 = arith.constant 0 : i32
    %c0_i32_0 = arith.constant 0 : i32
    %c0_i32_1 = arith.constant 0 : i32
    return %c0_i32, %c0_i32_0 : i32, i32
  }
  func.func @transform_2(%arg0: i32, %arg1: i32) -> (i32, i32) {
    %c0_i32 = arith.constant 0 : i32
    %c0_i32_0 = arith.constant 0 : i32
    %c0_i32_1 = arith.constant 0 : i32
    return %c0_i32, %c0_i32_0 : i32, i32
  }
  func.func @transform_3(%arg0: i32, %arg1: i32) -> (i32, i32, i32, i32) {
    %c0_i32 = arith.constant 0 : i32
    %c0_i32_0 = arith.constant 0 : i32
    %c0_i32_1 = arith.constant 0 : i32
    return %arg0, %c0_i32, %arg1, %c0_i32_0 : i32, i32, i32, i32
  }
  func.func @transform_4(%arg0: i32, %arg1: i32) -> (i32, i32, i32, i32) {
    %c0_i32 = arith.constant 0 : i32
    %c0_i32_0 = arith.constant 0 : i32
    %c0_i32_1 = arith.constant 0 : i32
    return %arg0, %c0_i32, %arg1, %c0_i32_0 : i32, i32, i32, i32
  }
  func.func @transform_5(%arg0: i32, %arg1: i32) -> (i32, i32, i32, i32) {
    %c0_i32 = arith.constant 0 : i32
    %c0_i32_0 = arith.constant 0 : i32
    %c0_i32_1 = arith.constant 0 : i32
    return %arg0, %c0_i32, %arg1, %c0_i32_0 : i32, i32, i32, i32
  }
}

</mosaic_0001>

<llo_original>
// kernel: tpu_custom_call.1
$region0: #{tpu_custom_call.1}
  #allocation0 [shape = 'u32[]', space=smem, size = 0x4, offset = 0x4, fixed_abs, tag = 'smem constant byte address 0x4 - core index']
  #allocation1 [shape = 'u32[144,128]{1,0:T(1,128)}', space=vmem, size = 0x12000, scoped, tag = 'internal scratch']
  %s0 = inlined_call_operand.hbm [shape: f32[2,256,128], index: 0, kind: input, shape index: {}]
  %s1 = inlined_call_operand.hbm [shape: bf16[128,384], index: 1, kind: input, shape index: {}]
  %s2 = inlined_call_operand.vmem [shape: f32[1,384], index: 2, kind: input, shape index: {}]
  %s3 = inlined_call_operand.vmem [shape: bf16[2,2,256,64], index: 3, kind: output, shape index: {0}]
  %s4 = inlined_call_operand.vmem [shape: bf16[2,2,256,64], index: 4, kind: output, shape index: {1}]
  %s5 = inlined_call_operand.vmem [shape: bf16[2,2,256,64], index: 5, kind: output, shape index: {2}]
  %6 = xla_tuple %s3, %s4, %s5
  %s7 = sld [smem:[#allocation0]]
  $region180: #{tpu_custom_call.1} parent=0
    _
  %s9 = ssub.s32 1, %s7
  %s10 = scalar_select 0, %s9, %s7
  $region1: #{tpu_custom_call.1} parent=0
    #allocation2 [shape = 'u8[131072]{0}', space=vmem, size = 0x20000, scoped, tag = 'input window, operand 0']
    #allocation3 [shape = 's32[2]{0}', space=sflag, size = 0x8, scoped, tag = 'scoped memory for tpu_custom_call.1']
    #allocation4 [shape = 'u8[98304]{0}', space=vmem, size = 0x18000, scoped, tag = 'input window, operand 1, single buffered']
    #allocation5 [shape = 's32[1]{0}', space=sflag, size = 0x4, scoped, tag = 'scoped memory for tpu_custom_call.1']
    #allocation6 [shape = 'u8[131072]{0}', space=vmem, size = 0x20000, scoped, tag = 'output window, operand 0']
    #allocation7 [shape = 'u8[131072]{0}', space=vmem, size = 0x20000, scoped, tag = 'output window, operand 1']
    #allocation8 [shape = 'u8[131072]{0}', space=vmem, size = 0x20000, scoped, tag = 'output window, operand 2']
    %11 = vsyncpa [#allocation3], 0
    %s12 = scalar_lea.sflag [#allocation3], 1
    %13 = vsyncpa %s12, 0
    %14 = vsyncpa [#allocation5], 0
    loop: start=0, step=1, limit=6
    $region2: #{tpu_custom_call.1} parent=1 // loop_pre_header
      _
    $region3: #{tpu_custom_call.1} parent=1 // loop_header
      %s16 = sphi 0, %s20
      %p17 = scmp.ge.s32.totalorder %s16, 6
      %s23 = sphi 0, %s35
      %s24 = sphi 0, %s31
      %s25 = sphi 0, %s23
      %s26 = sphi 0, %s24
      %s27 = sphi 0, %s25
      %s28 = sphi 0, %s26
      %s40 = sphi 0, %s42
      %s43 = sphi 0, %s40
      %s44 = sphi 0, %s43
      %s60 = sphi 0, %s44
      %s64 = sphi 0, %s64
      %s66 = sphi 0, %s64
      %s67 = sphi 0, %s66
      %s81 = sphi 0, %s67
      %s85 = sphi 0, %s85
      %s87 = sphi 0, %s85
      %s88 = sphi 0, %s87
      %s102 = sphi 0, %s88
      %s110 = sphi 0, %s112
      %s113 = sphi 0, %s110
      %s114 = sphi 0, %s113
      %s130 = sphi 0, %s114
      %s138 = sphi 0, %s140
      %s141 = sphi 0, %s138
      %s142 = sphi 0, %s141
      %s158 = sphi 0, %s142
      %s166 = sphi 0, %s168
      %s169 = sphi 0, %s166
      %s170 = sphi 0, %s169
      %s186 = sphi 0, %s170
    $region4: #{tpu_custom_call.1} parent=1 // loop_header_branch
      %19 = sbr.rel (%p17) target = $region8
    $region5: #{tpu_custom_call.1} parent=1 // loop_body
      %s21 = ssub.s32 %s16, 1
      %s22 = ssub.s32 %s16, 2
      %s29 = sadd.s32 1, %s24
      %p30 = scmp.ge.s32.totalorder %s29, 2
      %s31 = scalar_select %p30, 0, %s29
      %s32 = sadd.s32 1, %s23
      %s33 = scalar_select %p30, %s32, %s23
      %p34 = scmp.ge.s32.totalorder %s33, 2
      %s35 = scalar_select %p34, 0, %s33
      %s36 = ssub.s32 %s23, %s35
      %s37 = ssub.s32 %s24, %s31
      %s38 = sor.u32 %s36, %s37
      %p39 = scmp.eq.s32.totalorder %s38, 0
      %s41 = sadd.s32 %s40, 1
      %s42 = scalar_select %p39, %s40, %s41
      %p45 = pneg %p39
      %p46 = scmp.eq.s32.totalorder %s16, 3
      %p47 = por %p45, %p46
      %p48 = scmp.ne.s32.totalorder %s40, %s43
      %p49 = scmp.eq.s32.totalorder %s16, 0
      %p50 = por %p48, %p49
      %p51 = scmp.ne.s32.totalorder %s40, %s43
      %p52 = scmp.eq.s32.totalorder %s21, 3
      %p53 = por %p51, %p52
      %p54 = scmp.ne.s32.totalorder %s43, %s44
      %p55 = scmp.eq.s32.totalorder %s21, 0
      %p56 = por %p54, %p55
      %p57 = scmp.ne.s32.totalorder %s43, %s44
      %p58 = scmp.eq.s32.totalorder %s22, 3
      %p59 = por %p57, %p58
      %p61 = scmp.ne.s32.totalorder %s44, %s60
      %p62 = scmp.eq.s32.totalorder %s22, 0
      %p63 = por %p61, %p62
      %s65 = sadd.s32 %s64, 1
      %p68 = scmp.eq.s32.totalorder %s16, 3
      %p69 = scmp.ne.s32.totalorder %s64, %s66
      %p70 = scmp.eq.s32.totalorder %s16, 0
      %p71 = por %p69, %p70
      %p72 = scmp.ne.s32.totalorder %s64, %s66
      %p73 = scmp.eq.s32.totalorder %s21, 3
      %p74 = por %p72, %p73
      %p75 = scmp.ne.s32.totalorder %s66, %s67
      %p76 = scmp.eq.s32.totalorder %s21, 0
      %p77 = por %p75, %p76
      %p78 = scmp.ne.s32.totalorder %s66, %s67
      %p79 = scmp.eq.s32.totalorder %s22, 3
      %p80 = por %p78, %p79
      %p82 = scmp.ne.s32.totalorder %s67, %s81
      %p83 = scmp.eq.s32.totalorder %s22, 0
      %p84 = por %p82, %p83
      %s86 = sadd.s32 %s85, 1
      %p89 = scmp.eq.s32.totalorder %s16, 3
      %p90 = scmp.ne.s32.totalorder %s85, %s87
      %p91 = scmp.eq.s32.totalorder %s16, 0
      %p92 = por %p90, %p91
      %p93 = scmp.ne.s32.totalorder %s85, %s87
      %p94 = scmp.eq.s32.totalorder %s21, 3
      %p95 = por %p93, %p94
      %p96 = scmp.ne.s32.totalorder %s87, %s88
      %p97 = scmp.eq.s32.totalorder %s21, 0
      %p98 = por %p96, %p97
      %p99 = scmp.ne.s32.totalorder %s87, %s88
      %p100 = scmp.eq.s32.totalorder %s22, 3
      %p101 = por %p99, %p100
      %p103 = scmp.ne.s32.totalorder %s88, %s102
      %p104 = scmp.eq.s32.totalorder %s22, 0
      %p105 = por %p103, %p104
      %s106 = ssub.s32 %s23, %s35
      %s107 = ssub.s32 %s24, %s31
      %s108 = sor.u32 %s106, %s107
      %p109 = scmp.eq.s32.totalorder %s108, 0
      %s111 = sadd.s32 %s110, 1
      %s112 = scalar_select %p109, %s110, %s111
      %p115 = pneg %p109
      %p116 = scmp.eq.s32.totalorder %s16, 3
      %p117 = por %p115, %p116
      %p118 = scmp.ne.s32.totalorder %s110, %s113
      %p119 = scmp.eq.s32.totalorder %s16, 0
      %p120 = por %p118, %p119
      %p121 = scmp.ne.s32.totalorder %s110, %s113
      %p122 = scmp.eq.s32.totalorder %s21, 3
      %p123 = por %p121, %p122
      %p124 = scmp.ne.s32.totalorder %s113, %s114
      %p125 = scmp.eq.s32.totalorder %s21, 0
      %p126 = por %p124, %p125
      %p127 = scmp.ne.s32.totalorder %s113, %s114
      %p128 = scmp.eq.s32.totalorder %s22, 3
      %p129 = por %p127, %p128
      %p131 = scmp.ne.s32.totalorder %s114, %s130
      %p132 = scmp.eq.s32.totalorder %s22, 0
      %p133 = por %p131, %p132
      %s134 = ssub.s32 %s23, %s35
      %s135 = ssub.s32 %s24, %s31
      %s136 = sor.u32 %s134, %s135
      %p137 = scmp.eq.s32.totalorder %s136, 0
      %s139 = sadd.s32 %s138, 1
      %s140 = scalar_select %p137, %s138, %s139
      %p143 = pneg %p137
      %p144 = scmp.eq.s32.totalorder %s16, 3
      %p145 = por %p143, %p144
      %p146 = scmp.ne.s32.totalorder %s138, %s141
      %p147 = scmp.eq.s32.totalorder %s16, 0
      %p148 = por %p146, %p147
      %p149 = scmp.ne.s32.totalorder %s138, %s141
      %p150 = scmp.eq.s32.totalorder %s21, 3
      %p151 = por %p149, %p150
      %p152 = scmp.ne.s32.totalorder %s141, %s142
      %p153 = scmp.eq.s32.totalorder %s21, 0
      %p154 = por %p152, %p153
      %p155 = scmp.ne.s32.totalorder %s141, %s142
      %p156 = scmp.eq.s32.totalorder %s22, 3
      %p157 = por %p155, %p156
      %p159 = scmp.ne.s32.totalorder %s142, %s158
      %p160 = scmp.eq.s32.totalorder %s22, 0
      %p161 = por %p159, %p160
      %s162 = ssub.s32 %s23, %s35
      %s163 = ssub.s32 %s24, %s31
      %s164 = sor.u32 %s162, %s163
      %p165 = scmp.eq.s32.totalorder %s164, 0
      %s167 = sadd.s32 %s166, 1
      %s168 = scalar_select %p165, %s166, %s167
      %p171 = pneg %p165
      %p172 = scmp.eq.s32.totalorder %s16, 3
      %p173 = por %p171, %p172
      %p174 = scmp.ne.s32.totalorder %s166, %s169
      %p175 = scmp.eq.s32.totalorder %s16, 0
      %p176 = por %p174, %p175
      %p177 = scmp.ne.s32.totalorder %s166, %s169
      %p178 = scmp.eq.s32.totalorder %s21, 3
      %p179 = por %p177, %p178
      %p180 = scmp.ne.s32.totalorder %s169, %s170
      %p181 = scmp.eq.s32.totalorder %s21, 0
      %p182 = por %p180, %p181
      %p183 = scmp.ne.s32.totalorder %s169, %s170
      %p184 = scmp.eq.s32.totalorder %s22, 3
      %p185 = por %p183, %p184
      %p187 = scmp.ne.s32.totalorder %s170, %s186
      %p188 = scmp.eq.s32.totalorder %s22, 0
      %p189 = por %p187, %p188
      %p190 = scmp.le.s32.totalorder 1, %s16
      %p191 = scmp.lt.s32.totalorder %s16, 5
      %p192 = pnand %p190, %p191
      %p193 = pneg %p192
      // Predicated region
      $region9: #{tpu_custom_call.1} parent=5 // pred_check
        _
      $region10: #{tpu_custom_call.1} parent=5 // pred_check_branch
        %195 = sbr.rel (%p192) target = $region12
      $region11: #{tpu_custom_call.1} parent=5 // pred_region
        %s196 = ssub.s32 %s16, 1
        // Predicated region
        $region13: #{tpu_custom_call.1} parent=11 // pred_check
          %p197 = pneg %p77
        $region14: #{tpu_custom_call.1} parent=11 // pred_check_branch
          %199 = sbr.rel (%p197) target = $region16
        $region15: #{tpu_custom_call.1} parent=11 // pred_region
          %s201 = ssub.s32 3072, 3072
          %202 = vsyncadd [#allocation5], %s201
          %s203 = sshll.u32 [#allocation4], 4
          %s204 = int_to_ptr.vmem [resolvable:$true] %s203
          %209 = dma.hbm_to_vmem [thread:$0]  %s1, 3072, %s204, [#allocation5], 192, 192, 12
        $region16: #{tpu_custom_call.1} parent=11 // pred_fallthru
          _
        // Predicated region
        $region17: #{tpu_custom_call.1} parent=11 // pred_check
          %p210 = pneg %p98
        $region18: #{tpu_custom_call.1} parent=11 // pred_check_branch
          %212 = sbr.rel (%p210) target = $region20
        $region19: #{tpu_custom_call.1} parent=11 // pred_region
          _
        $region20: #{tpu_custom_call.1} parent=11 // pred_fallthru
          _
      $region12: #{tpu_custom_call.1} parent=5 // pred_fallthru
        _
      %p213 = scmp.lt.s32.totalorder %s16, 4
      // Predicated region
      $region21: #{tpu_custom_call.1} parent=5 // pred_check
        %p214 = pneg %p213
      $region22: #{tpu_custom_call.1} parent=5 // pred_check_branch
        %216 = sbr.rel (%p214) target = $region24
      $region23: #{tpu_custom_call.1} parent=5 // pred_region
        // Predicated region
        $region25: #{tpu_custom_call.1} parent=23 // pred_check
          %p217 = pneg %p50
        $region26: #{tpu_custom_call.1} parent=23 // pred_check_branch
          %219 = sbr.rel (%p217) target = $region28
        $region27: #{tpu_custom_call.1} parent=23 // pred_region
          %s220 = sand.u32 %s40, 1
          %s221 = scalar_lea.sflag [#allocation3], %s220
          %s222 = sand.u32 %s40, 1
          %s223 = smul.addr %s222, 128
          %s224 = scalar_lea.vmem [#allocation2], %s223
          %s225 = smul.u32 16, %s24
          %s227 = ssub.s32 2048, 2048
          %228 = vsyncadd %s221, %s227
          %s229 = smul.addr %s23, 32
          %s230 = sadd.s32 %s225, %s229
          %s231 = smul.addr %s230, 128
          %s232 = scalar_lea.hbm %s0, %s231
          %s233 = sshll.u32 %s224, 4
          %s234 = int_to_ptr.vmem [resolvable:$true] %s233
          %239 = dma.hbm_to_vmem [thread:$0]  %s232, 2048, %s234, %s221, 128, 128, 8
        $region28: #{tpu_custom_call.1} parent=23 // pred_fallthru
          _
      $region24: #{tpu_custom_call.1} parent=5 // pred_fallthru
        _
      %p240 = scmp.le.s32.totalorder 1, %s16
      %p241 = scmp.lt.s32.totalorder %s16, 5
      %p242 = pnand %p240, %p241
      %p243 = pneg %p242
      // Predicated region
      $region29: #{tpu_custom_call.1} parent=5 // pred_check
        _
      $region30: #{tpu_custom_call.1} parent=5 // pred_check_branch
        %245 = sbr.rel (%p242) target = $region32
      $region31: #{tpu_custom_call.1} parent=5 // pred_region
        %s246 = ssub.s32 %s16, 1
        %s247 = sand.u32 %s43, 1
        %s248 = scalar_lea.sflag [#allocation3], %s247
        %s249 = sand.u32 %s43, 1
        %s250 = smul.addr %s249, 128
        %s251 = scalar_lea.vmem [#allocation2], %s250
        // Predicated region
        $region33: #{tpu_custom_call.1} parent=31 // pred_check
          %p252 = pneg %p56
        $region34: #{tpu_custom_call.1} parent=31 // pred_check_branch
          %254 = sbr.rel (%p252) target = $region36
        $region35: #{tpu_custom_call.1} parent=31 // pred_region
          %255 = dma.done %s248, 2048
        $region36: #{tpu_custom_call.1} parent=31 // pred_fallthru
          _
        // Predicated region
        $region37: #{tpu_custom_call.1} parent=31 // pred_check
          %p256 = pneg %p77
        $region38: #{tpu_custom_call.1} parent=31 // pred_check_branch
          %258 = sbr.rel (%p256) target = $region40
        $region39: #{tpu_custom_call.1} parent=31 // pred_region
          %259 = dma.done [#allocation5], 3072
        $region40: #{tpu_custom_call.1} parent=31 // pred_fallthru
          _
        %s260 = sand.u32 %s43, 1
        %s261 = scalar_lea.sflag [#allocation3], %s260
        %s262 = sand.u32 %s43, 1
        %s263 = smul.addr %s262, 128
        %s264 = scalar_lea.vmem [#allocation2], %s263
        %p265 = pneg %p56
        %p266 = pneg %p53
        %p267 = pneg %p77
        %p268 = pneg %p74
        %p269 = pneg %p98
        %p270 = pneg %p95
        %p271 = pneg %p126
        %p272 = pneg %p123
        %s273 = sand.u32 %s113, 1
        %s274 = sand.u32 %s113, 1
        %s275 = smul.addr %s274, 128
        %s276 = scalar_lea.vmem [#allocation6], %s275
        %p277 = pneg %p154
        %p278 = pneg %p151
        %s279 = sand.u32 %s141, 1
        %s280 = sand.u32 %s141, 1
        %s281 = smul.addr %s280, 128
        %s282 = scalar_lea.vmem [#allocation7], %s281
        %p283 = pneg %p182
        %p284 = pneg %p179
        %s285 = sand.u32 %s169, 1
        %s286 = sand.u32 %s169, 1
        %s287 = smul.addr %s286, 128
        %s288 = scalar_lea.vmem [#allocation8], %s287
        %s289 = smul.u32 16, %s26
        %s290 = smul.u32 16, %s26
        %s291 = smul.u32 16, %s26
        %s292 = smul.u32 16, %s26
        %v294 = vld [vmem:[%s251] sm:$0xff]
        %v295 = vld [vmem:[%s251 + $0x8] sm:$0xff]
        %v296 = vld [vmem:[%s251 + $0x10] sm:$0xff]
        %v297 = vld [vmem:[%s251 + $0x18] sm:$0xff]
        %v298 = vld [vmem:[%s251 + $0x20] sm:$0xff]
        %v299 = vld [vmem:[%s251 + $0x28] sm:$0xff]
        %v300 = vld [vmem:[%s251 + $0x30] sm:$0xff]
        %v301 = vld [vmem:[%s251 + $0x38] sm:$0xff]
        %v302 = vld [vmem:[%s251 + $0x40] sm:$0xff]
        %v303 = vld [vmem:[%s251 + $0x48] sm:$0xff]
        %v304 = vld [vmem:[%s251 + $0x50] sm:$0xff]
        %v305 = vld [vmem:[%s251 + $0x58] sm:$0xff]
        %v306 = vld [vmem:[%s251 + $0x60] sm:$0xff]
        %v307 = vld [vmem:[%s251 + $0x68] sm:$0xff]
        %v308 = vld [vmem:[%s251 + $0x70] sm:$0xff]
        %v309 = vld [vmem:[%s251 + $0x78] sm:$0xff]
        %v310 = vpack.c.bf16 %v295, %v294
        %v311 = vpack.c.bf16 %v297, %v296
        %v312 = vpack.c.bf16 %v299, %v298
        %v313 = vpack.c.bf16 %v301, %v300
        %v314 = vpack.c.bf16 %v303, %v302
        %v315 = vpack.c.bf16 %v305, %v304
        %v316 = vpack.c.bf16 %v307, %v306
        %v317 = vpack.c.bf16 %v309, %v308
        %v318 = vld [vmem:[#allocation4] sm:$0xff]
        %v319 = vld [vmem:[#allocation4 + $0x8] sm:$0xf]
        %v320 = vld [vmem:[#allocation4 + $0xc] sm:$0xff]
        %v321 = vld [vmem:[#allocation4 + $0x14] sm:$0xf]
        %v322 = vld [vmem:[#allocation4 + $0x18] sm:$0xff]
        %v323 = vld [vmem:[#allocation4 + $0x20] sm:$0xf]
        %v324 = vld [vmem:[#allocation4 + $0x24] sm:$0xff]
        %v325 = vld [vmem:[#allocation4 + $0x2c] sm:$0xf]
        %v326 = vld [vmem:[#allocation4 + $0x30] sm:$0xff]
        %v327 = vld [vmem:[#allocation4 + $0x38] sm:$0xf]
        %v328 = vld [vmem:[#allocation4 + $0x3c] sm:$0xff]
        %v329 = vld [vmem:[#allocation4 + $0x44] sm:$0xf]
        %v330 = vld [vmem:[#allocation4 + $0x48] sm:$0xff]
        %v331 = vld [vmem:[#allocation4 + $0x50] sm:$0xf]
        %v332 = vld [vmem:[#allocation4 + $0x54] sm:$0xff]
        %v333 = vld [vmem:[#allocation4 + $0x5c] sm:$0xf]
        %v334 = vld [vmem:[#allocation4 + $0x60] sm:$0xff]
        %v335 = vld [vmem:[#allocation4 + $0x68] sm:$0xf]
        %v336 = vld [vmem:[#allocation4 + $0x6c] sm:$0xff]
        %v337 = vld [vmem:[#allocation4 + $0x74] sm:$0xf]
        %v338 = vld [vmem:[#allocation4 + $0x78] sm:$0xff]
        %v339 = vld [vmem:[#allocation4 + $0x80] sm:$0xf]
        %v340 = vld [vmem:[#allocation4 + $0x84] sm:$0xff]
        %v341 = vld [vmem:[#allocation4 + $0x8c] sm:$0xf]
        %v342 = vld [vmem:[#allocation4 + $0x90] sm:$0xff]
        %v343 = vld [vmem:[#allocation4 + $0x98] sm:$0xf]
        %v344 = vld [vmem:[#allocation4 + $0x9c] sm:$0xff]
        %v345 = vld [vmem:[#allocation4 + $0xa4] sm:$0xf]
        %v346 = vld [vmem:[#allocation4 + $0xa8] sm:$0xff]
        %v347 = vld [vmem:[#allocation4 + $0xb0] sm:$0xf]
        %v348 = vld [vmem:[#allocation4 + $0xb4] sm:$0xff]
        %v349 = vld [vmem:[#allocation4 + $0xbc] sm:$0xf]
        %v350 = vld [vmem:[%s2] sm:$0x7]
        %v352 = vlaneseq
        %v353 = vshrl.u32 %v352, 7
        %v354 = vsub.s32 0, %v353
        %v355 = vrot.slane %v350, %v354
        %v356 = vlaneseq
        %v357 = vshrl.u32 %v356, 7
        %v358 = vsub.s32 1, %v357
        %v359 = vrot.slane %v350, %v358
        %v360 = vlaneseq
        %v361 = vshrl.u32 %v360, 7
        %v362 = vsub.s32 2, %v361
        %v363 = vrot.slane %v350, %v362
        %v399 = vunpack.c.l.b16 %v318
        %v400 = vunpack.c.h.b16 %v318
        %v401 = vunpack.c.l.b16 %v319
        %v402 = vunpack.c.l.b16 %v320
        %v403 = vunpack.c.h.b16 %v320
        %v404 = vunpack.c.l.b16 %v321
        %v405 = vunpack.c.l.b16 %v322
        %v406 = vunpack.c.h.b16 %v322
        %v407 = vunpack.c.l.b16 %v323
        %v408 = vunpack.c.l.b16 %v324
        %v409 = vunpack.c.h.b16 %v324
        %v410 = vunpack.c.l.b16 %v325
        %v411 = vunpack.c.l.b16 %v326
        %v412 = vunpack.c.h.b16 %v326
        %v413 = vunpack.c.l.b16 %v327
        %v414 = vunpack.c.l.b16 %v328
        %v415 = vunpack.c.h.b16 %v328
        %v416 = vunpack.c.l.b16 %v329
        %v417 = vunpack.c.l.b16 %v330
        %v418 = vunpack.c.h.b16 %v330
        %v419 = vunpack.c.l.b16 %v331
        %v420 = vunpack.c.l.b16 %v332
        %v421 = vunpack.c.h.b16 %v332
        %v422 = vunpack.c.l.b16 %v333
        %v423 = vunpack.c.l.b16 %v334
        %v424 = vunpack.c.h.b16 %v334
        %v425 = vunpack.c.l.b16 %v335
        %v426 = vunpack.c.l.b16 %v336
        %v427 = vunpack.c.h.b16 %v336
        %v428 = vunpack.c.l.b16 %v337
        %v429 = vunpack.c.l.b16 %v338
        %v430 = vunpack.c.h.b16 %v338
        %v431 = vunpack.c.l.b16 %v339
        %v432 = vunpack.c.l.b16 %v340
        %v433 = vunpack.c.h.b16 %v340
        %v434 = vunpack.c.l.b16 %v341
        %v435 = vunpack.c.l.b16 %v342
        %v436 = vunpack.c.h.b16 %v342
        %v437 = vunpack.c.l.b16 %v343
        %v438 = vunpack.c.l.b16 %v344
        %v439 = vunpack.c.h.b16 %v344
        %v440 = vunpack.c.l.b16 %v345
        %v441 = vunpack.c.l.b16 %v346
        %v442 = vunpack.c.h.b16 %v346
        %v443 = vunpack.c.l.b16 %v347
        %v444 = vunpack.c.l.b16 %v348
        %v445 = vunpack.c.h.b16 %v348
        %v446 = vunpack.c.l.b16 %v349
        %v447 = vpack.c.b16 %v402, %v399
        %v448 = vpack.c.b16 %v403, %v400
        %v449 = vpack.c.b16 %v404, %v401
        %v450 = vpack.c.b16 %v408, %v405
        %v451 = vpack.c.b16 %v409, %v406
        %v452 = vpack.c.b16 %v410, %v407
        %v453 = vpack.c.b16 %v414, %v411
        %v454 = vpack.c.b16 %v415, %v412
        %v455 = vpack.c.b16 %v416, %v413
        %v456 = vpack.c.b16 %v420, %v417
        %v457 = vpack.c.b16 %v421, %v418
        %v458 = vpack.c.b16 %v422, %v419
        %v459 = vpack.c.b16 %v426, %v423
        %v460 = vpack.c.b16 %v427, %v424
        %v461 = vpack.c.b16 %v428, %v425
        %v462 = vpack.c.b16 %v432, %v429
        %v463 = vpack.c.b16 %v433, %v430
        %v464 = vpack.c.b16 %v434, %v431
        %v465 = vpack.c.b16 %v438, %v435
        %v466 = vpack.c.b16 %v439, %v436
        %v467 = vpack.c.b16 %v440, %v437
        %v468 = vpack.c.b16 %v444, %v441
        %v469 = vpack.c.b16 %v445, %v442
        %v470 = vpack.c.b16 %v446, %v443
        %495 = vmatprep.subr.bf16.mxu0 %v448
        %496 = vmatpush1.bf16.msra.mxu0 %v447
        %497 = vmatprep.subr.bf16.mxu0 %v451
        %498 = vmatpush1.bf16.msra.mxu0 %v450
        %499 = vmatprep.subr.bf16.mxu0 %v454
        %500 = vmatpush1.bf16.msra.mxu0 %v453
        %501 = vmatprep.subr.bf16.mxu0 %v457
        %502 = vmatpush1.bf16.msra.mxu0 %v456
        %503 = vmatprep.subr.bf16.mxu0 %v460
        %504 = vmatpush1.bf16.msra.mxu0 %v459
        %505 = vmatprep.subr.bf16.mxu0 %v463
        %506 = vmatpush1.bf16.msra.mxu0 %v462
        %507 = vmatprep.subr.bf16.mxu0 %v466
        %508 = vmatpush1.bf16.msra.mxu0 %v465
        %509 = vmatprep.subr.bf16.mxu0 %v469
        %510 = vmatpush1.bf16.msra.mxu0 %v468
        %511 = vmatprep.subr.bf16.mxu0 0
        %512 = vmatpush1.bf16.msra.mxu0 0
        %513 = vmatprep.subr.bf16.mxu0 0
        %514 = vmatpush1.bf16.msra.mxu0 0
        %515 = vmatprep.subr.bf16.mxu0 0
        %516 = vmatpush1.bf16.msra.mxu0 0
        %517 = vmatprep.subr.bf16.mxu0 0
        %518 = vmatpush1.bf16.msra.mxu0 0
        %519 = vmatprep.subr.bf16.mxu0 0
        %520 = vmatpush1.bf16.msra.mxu0 0
        %521 = vmatprep.subr.bf16.mxu0 0
        %522 = vmatpush1.bf16.msra.mxu0 0
        %523 = vmatprep.subr.bf16.mxu0 0
        %524 = vmatpush1.bf16.msra.mxu0 0
        %525 = vmatprep.subr.bf16.mxu0 0
        %526 = vmatpush1.bf16.msra.mxu0 0
        %527 = vmatprep.mubr.bf16.mxu0 0
        %528 = vmatmul.mubr.bf16.gmra.mrb[0].mxu0 %v310
        %v529 = vpop.f32.mrb[0].mxu0
        %v530 = vadd.f32 %v355, %v529
        %v531 = vpop.f32.mrb[0].mxu0
        %v532 = vadd.f32 %v359, %v531
        %v533 = vpop.f32.mrb[0].mxu0
        %v534 = vadd.f32 %v355, %v533
        %v535 = vpop.f32.mrb[0].mxu0
        %v536 = vadd.f32 %v359, %v535
        %537 = vmatprep.mubr.bf16.mxu0 0
        %538 = vmatmul.mubr.bf16.gmra.mrb[0].mxu0 %v311
        %v539 = vpop.f32.mrb[0].mxu0
        %v540 = vadd.f32 %v355, %v539
        %v541 = vpop.f32.mrb[0].mxu0
        %v542 = vadd.f32 %v359, %v541
        %v543 = vpop.f32.mrb[0].mxu0
        %v544 = vadd.f32 %v355, %v543
        %v545 = vpop.f32.mrb[0].mxu0
        %v546 = vadd.f32 %v359, %v545
        %547 = vmatprep.mubr.bf16.mxu0 0
        %548 = vmatmul.mubr.bf16.gmra.mrb[0].mxu0 %v312
        %v549 = vpop.f32.mrb[0].mxu0
        %v550 = vadd.f32 %v355, %v549
        %v551 = vpop.f32.mrb[0].mxu0
        %v552 = vadd.f32 %v359, %v551
        %v553 = vpop.f32.mrb[0].mxu0
        %v554 = vadd.f32 %v355, %v553
        %v555 = vpop.f32.mrb[0].mxu0
        %v556 = vadd.f32 %v359, %v555
        %557 = vmatprep.mubr.bf16.mxu0 0
        %558 = vmatmul.mubr.bf16.gmra.mrb[0].mxu0 %v313
        %v559 = vpop.f32.mrb[0].mxu0
        %v560 = vadd.f32 %v355, %v559
        %v561 = vpop.f32.mrb[0].mxu0
        %v562 = vadd.f32 %v359, %v561
        %v563 = vpop.f32.mrb[0].mxu0
        %v564 = vadd.f32 %v355, %v563
        %v565 = vpop.f32.mrb[0].mxu0
        %v566 = vadd.f32 %v359, %v565
        %567 = vmatprep.mubr.bf16.mxu0 0
        %568 = vmatmul.mubr.bf16.gmra.mrb[0].mxu0 %v314
        %v569 = vpop.f32.mrb[0].mxu0
        %v570 = vadd.f32 %v355, %v569
        %v571 = vpop.f32.mrb[0].mxu0
        %v572 = vadd.f32 %v359, %v571
        %v573 = vpop.f32.mrb[0].mxu0
        %v574 = vadd.f32 %v355, %v573
        %v575 = vpop.f32.mrb[0].mxu0
        %v576 = vadd.f32 %v359, %v575
        %577 = vmatprep.mubr.bf16.mxu0 0
        %578 = vmatmul.mubr.bf16.gmra.mrb[0].mxu0 %v315
        %v579 = vpop.f32.mrb[0].mxu0
        %v580 = vadd.f32 %v355, %v579
        %v581 = vpop.f32.mrb[0].mxu0
        %v582 = vadd.f32 %v359, %v581
        %v583 = vpop.f32.mrb[0].mxu0
        %v584 = vadd.f32 %v355, %v583
        %v585 = vpop.f32.mrb[0].mxu0
        %v586 = vadd.f32 %v359, %v585
        %587 = vmatprep.mubr.bf16.mxu0 0
        %588 = vmatmul.mubr.bf16.gmra.mrb[0].mxu0 %v316
        %v589 = vpop.f32.mrb[0].mxu0
        %v590 = vadd.f32 %v355, %v589
        %v591 = vpop.f32.mrb[0].mxu0
        %v592 = vadd.f32 %v359, %v591
        %v593 = vpop.f32.mrb[0].mxu0
        %v594 = vadd.f32 %v355, %v593
        %v595 = vpop.f32.mrb[0].mxu0
        %v596 = vadd.f32 %v359, %v595
        %597 = vmatprep.mubr.bf16.mxu0 0
        %598 = vmatmul.mubr.bf16.gmra.mrb[0].mxu0 %v317
        %v599 = vpop.f32.mrb[0].mxu0
        %v600 = vadd.f32 %v355, %v599
        %v601 = vpop.f32.mrb[0].mxu0
        %v602 = vadd.f32 %v359, %v601
        %v603 = vpop.f32.mrb[0].mxu0
        %v604 = vadd.f32 %v355, %v603
        %v605 = vpop.f32.mrb[0].mxu0
        %v606 = vadd.f32 %v359, %v605
        %607 = vdwg.mxu0
        %608 = vmatprep.subr.bf16.mxu0 0
        %609 = vmatpush1.bf16.msra.mxu0 %v449
        %610 = vmatprep.subr.bf16.mxu0 0
        %611 = vmatpush1.bf16.msra.mxu0 %v452
        %612 = vmatprep.subr.bf16.mxu0 0
        %613 = vmatpush1.bf16.msra.mxu0 %v455
        %614 = vmatprep.subr.bf16.mxu0 0
        %615 = vmatpush1.bf16.msra.mxu0 %v458
        %616 = vmatprep.subr.bf16.mxu0 0
        %617 = vmatpush1.bf16.msra.mxu0 %v461
        %618 = vmatprep.subr.bf16.mxu0 0
        %619 = vmatpush1.bf16.msra.mxu0 %v464
        %620 = vmatprep.subr.bf16.mxu0 0
        %621 = vmatpush1.bf16.msra.mxu0 %v467
        %622 = vmatprep.subr.bf16.mxu0 0
        %623 = vmatpush1.bf16.msra.mxu0 %v470
        %624 = vmatprep.subr.bf16.mxu0 0
        %625 = vmatpush1.bf16.msra.mxu0 0
        %626 = vmatprep.subr.bf16.mxu0 0
        %627 = vmatpush1.bf16.msra.mxu0 0
        %628 = vmatprep.subr.bf16.mxu0 0
        %629 = vmatpush1.bf16.msra.mxu0 0
        %630 = vmatprep.subr.bf16.mxu0 0
        %631 = vmatpush1.bf16.msra.mxu0 0
        %632 = vmatprep.subr.bf16.mxu0 0
        %633 = vmatpush1.bf16.msra.mxu0 0
        %634 = vmatprep.subr.bf16.mxu0 0
        %635 = vmatpush1.bf16.msra.mxu0 0
        %636 = vmatprep.subr.bf16.mxu0 0
        %637 = vmatpush1.bf16.msra.mxu0 0
        %638 = vmatprep.subr.bf16.mxu0 0
        %639 = vmatpush1.bf16.msra.mxu0 0
        %640 = vmatprep.mubr.bf16.mxu0 0
        %641 = vmatmul.mubr.bf16.gmra.mrb[0].mxu0 %v310
        %v642 = vpop.f32.mrb[0].mxu0
        %v643 = vadd.f32 %v363, %v642
        %v644 = vpop.f32.mrb[0].mxu0
        %v645 = vpop.f32.mrb[0].mxu0
        %v646 = vadd.f32 %v363, %v645
        %v647 = vpop.f32.mrb[0].mxu0
        %648 = vmatprep.mubr.bf16.mxu0 0
        %649 = vmatmul.mubr.bf16.gmra.mrb[0].mxu0 %v311
        %v650 = vpop.f32.mrb[0].mxu0
        %v651 = vadd.f32 %v363, %v650
        %v652 = vpop.f32.mrb[0].mxu0
        %v653 = vpop.f32.mrb[0].mxu0
        %v654 = vadd.f32 %v363, %v653
        %v655 = vpop.f32.mrb[0].mxu0
        %656 = vmatprep.mubr.bf16.mxu0 0
        %657 = vmatmul.mubr.bf16.gmra.mrb[0].mxu0 %v312
        %v658 = vpop.f32.mrb[0].mxu0
        %v659 = vadd.f32 %v363, %v658
        %v660 = vpop.f32.mrb[0].mxu0
        %v661 = vpop.f32.mrb[0].mxu0
        %v662 = vadd.f32 %v363, %v661
        %v663 = vpop.f32.mrb[0].mxu0
        %664 = vmatprep.mubr.bf16.mxu0 0
        %665 = vmatmul.mubr.bf16.gmra.mrb[0].mxu0 %v313
        %v666 = vpop.f32.mrb[0].mxu0
        %v667 = vadd.f32 %v363, %v666
        %v668 = vpop.f32.mrb[0].mxu0
        %v669 = vpop.f32.mrb[0].mxu0
        %v670 = vadd.f32 %v363, %v669
        %v671 = vpop.f32.mrb[0].mxu0
        %672 = vmatprep.mubr.bf16.mxu0 0
        %673 = vmatmul.mubr.bf16.gmra.mrb[0].mxu0 %v314
        %v674 = vpop.f32.mrb[0].mxu0
        %v675 = vadd.f32 %v363, %v674
        %v676 = vpop.f32.mrb[0].mxu0
        %v677 = vpop.f32.mrb[0].mxu0
        %v678 = vadd.f32 %v363, %v677
        %v679 = vpop.f32.mrb[0].mxu0
        %680 = vmatprep.mubr.bf16.mxu0 0
        %681 = vmatmul.mubr.bf16.gmra.mrb[0].mxu0 %v315
        %v682 = vpop.f32.mrb[0].mxu0
        %v683 = vadd.f32 %v363, %v682
        %v684 = vpop.f32.mrb[0].mxu0
        %v685 = vpop.f32.mrb[0].mxu0
        %v686 = vadd.f32 %v363, %v685
        %v687 = vpop.f32.mrb[0].mxu0
        %688 = vmatprep.mubr.bf16.mxu0 0
        %689 = vmatmul.mubr.bf16.gmra.mrb[0].mxu0 %v316
        %v690 = vpop.f32.mrb[0].mxu0
        %v691 = vadd.f32 %v363, %v690
        %v692 = vpop.f32.mrb[0].mxu0
        %v693 = vpop.f32.mrb[0].mxu0
        %v694 = vadd.f32 %v363, %v693
        %v695 = vpop.f32.mrb[0].mxu0
        %696 = vmatprep.mubr.bf16.mxu0 0
        %697 = vmatmul.mubr.bf16.gmra.mrb[0].mxu0 %v317
        %v698 = vpop.f32.mrb[0].mxu0
        %v699 = vadd.f32 %v363, %v698
        %v700 = vpop.f32.mrb[0].mxu0
        %v701 = vpop.f32.mrb[0].mxu0
        %v702 = vadd.f32 %v363, %v701
        %v703 = vpop.f32.mrb[0].mxu0
        %704 = vdwg.mxu0
        %v705 = vmul.f32 %v530, 0.125
        %v706 = vmul.f32 %v534, 0.125
        %v707 = vmul.f32 %v540, 0.125
        %v708 = vmul.f32 %v544, 0.125
        %v709 = vmul.f32 %v550, 0.125
        %v710 = vmul.f32 %v554, 0.125
        %v711 = vmul.f32 %v560, 0.125
        %v712 = vmul.f32 %v564, 0.125
        %v713 = vmul.f32 %v570, 0.125
        %v714 = vmul.f32 %v574, 0.125
        %v715 = vmul.f32 %v580, 0.125
        %v716 = vmul.f32 %v584, 0.125
        %v717 = vmul.f32 %v590, 0.125
        %v718 = vmul.f32 %v594, 0.125
        %v719 = vmul.f32 %v600, 0.125
        %v720 = vmul.f32 %v604, 0.125
        %v721 = vpack.c.bf16 %v706, %v705
        %v722 = vpack.c.bf16 %v708, %v707
        %v723 = vpack.c.bf16 %v710, %v709
        %v724 = vpack.c.bf16 %v712, %v711
        %v725 = vpack.c.bf16 %v714, %v713
        %v726 = vpack.c.bf16 %v716, %v715
        %v727 = vpack.c.bf16 %v718, %v717
        %v728 = vpack.c.bf16 %v720, %v719
        %v737 = vunpack.c.l.b16 %v721
        %v738 = vunpack.c.h.b16 %v721
        %v739 = vunpack.c.l.b16 %v722
        %v740 = vunpack.c.h.b16 %v722
        %v741 = vunpack.c.l.b16 %v723
        %v742 = vunpack.c.h.b16 %v723
        %v743 = vunpack.c.l.b16 %v724
        %v744 = vunpack.c.h.b16 %v724
        %v745 = vunpack.c.l.b16 %v725
        %v746 = vunpack.c.h.b16 %v725
        %v747 = vunpack.c.l.b16 %v726
        %v748 = vunpack.c.h.b16 %v726
        %v749 = vunpack.c.l.b16 %v727
        %v750 = vunpack.c.h.b16 %v727
        %v751 = vunpack.c.l.b16 %v728
        %v752 = vunpack.c.h.b16 %v728
        %v753 = vpack.c.b16 %v737, %v737
        %v754 = vpack.c.b16 %v738, %v738
        %v755 = vpack.c.b16 %v739, %v739
        %v756 = vpack.c.b16 %v740, %v740
        %v757 = vpack.c.b16 %v741, %v741
        %v758 = vpack.c.b16 %v742, %v742
        %v759 = vpack.c.b16 %v743, %v743
        %v760 = vpack.c.b16 %v744, %v744
        %v761 = vpack.c.b16 %v745, %v745
        %v762 = vpack.c.b16 %v746, %v746
        %v763 = vpack.c.b16 %v747, %v747
        %v764 = vpack.c.b16 %v748, %v748
        %v765 = vpack.c.b16 %v749, %v749
        %v766 = vpack.c.b16 %v750, %v750
        %v767 = vpack.c.b16 %v751, %v751
        %v768 = vpack.c.b16 %v752, %v752
        %vm785 = vcmask 519168
        %786 = vst.msk [vmem:[%s276] sm:$0xf] %vm785, %v753
        %787 = vst.msk [vmem:[%s276 + $0x4] sm:$0xf] %vm785, %v754
        %788 = vst.msk [vmem:[%s276 + $0x8] sm:$0xf] %vm785, %v755
        %789 = vst.msk [vmem:[%s276 + $0xc] sm:$0xf] %vm785, %v756
        %790 = vst.msk [vmem:[%s276 + $0x10] sm:$0xf] %vm785, %v757
        %791 = vst.msk [vmem:[%s276 + $0x14] sm:$0xf] %vm785, %v758
        %792 = vst.msk [vmem:[%s276 + $0x18] sm:$0xf] %vm785, %v759
        %793 = vst.msk [vmem:[%s276 + $0x1c] sm:$0xf] %vm785, %v760
        %794 = vst.msk [vmem:[%s276 + $0x20] sm:$0xf] %vm785, %v761
        %795 = vst.msk [vmem:[%s276 + $0x24] sm:$0xf] %vm785, %v762
        %796 = vst.msk [vmem:[%s276 + $0x28] sm:$0xf] %vm785, %v763
        %797 = vst.msk [vmem:[%s276 + $0x2c] sm:$0xf] %vm785, %v764
        %798 = vst.msk [vmem:[%s276 + $0x30] sm:$0xf] %vm785, %v765
        %799 = vst.msk [vmem:[%s276 + $0x34] sm:$0xf] %vm785, %v766
        %800 = vst.msk [vmem:[%s276 + $0x38] sm:$0xf] %vm785, %v767
        %801 = vst.msk [vmem:[%s276 + $0x3c] sm:$0xf] %vm785, %v768
        %v802 = vpack.c.bf16 %v536, %v532
        %v803 = vpack.c.bf16 %v546, %v542
        %v804 = vpack.c.bf16 %v556, %v552
        %v805 = vpack.c.bf16 %v566, %v562
        %v806 = vpack.c.bf16 %v576, %v572
        %v807 = vpack.c.bf16 %v586, %v582
        %v808 = vpack.c.bf16 %v596, %v592
        %v809 = vpack.c.bf16 %v606, %v602
        %v818 = vunpack.c.l.b16 %v802
        %v819 = vunpack.c.h.b16 %v802
        %v820 = vunpack.c.l.b16 %v803
        %v821 = vunpack.c.h.b16 %v803
        %v822 = vunpack.c.l.b16 %v804
        %v823 = vunpack.c.h.b16 %v804
        %v824 = vunpack.c.l.b16 %v805
        %v825 = vunpack.c.h.b16 %v805
        %v826 = vunpack.c.l.b16 %v806
        %v827 = vunpack.c.h.b16 %v806
        %v828 = vunpack.c.l.b16 %v807
        %v829 = vunpack.c.h.b16 %v807
        %v830 = vunpack.c.l.b16 %v808
        %v831 = vunpack.c.h.b16 %v808
        %v832 = vunpack.c.l.b16 %v809
        %v833 = vunpack.c.h.b16 %v809
        %v834 = vpack.c.b16 %v818, %v818
        %v835 = vpack.c.b16 %v819, %v819
        %v836 = vpack.c.b16 %v820, %v820
        %v837 = vpack.c.b16 %v821, %v821
        %v838 = vpack.c.b16 %v822, %v822
        %v839 = vpack.c.b16 %v823, %v823
        %v840 = vpack.c.b16 %v824, %v824
        %v841 = vpack.c.b16 %v825, %v825
        %v842 = vpack.c.b16 %v826, %v826
        %v843 = vpack.c.b16 %v827, %v827
        %v844 = vpack.c.b16 %v828, %v828
        %v845 = vpack.c.b16 %v829, %v829
        %v846 = vpack.c.b16 %v830, %v830
        %v847 = vpack.c.b16 %v831, %v831
        %v848 = vpack.c.b16 %v832, %v832
        %v849 = vpack.c.b16 %v833, %v833
        %866 = vst.msk [vmem:[%s282] sm:$0xf] %vm785, %v834
        %867 = vst.msk [vmem:[%s282 + $0x4] sm:$0xf] %vm785, %v835
        %868 = vst.msk [vmem:[%s282 + $0x8] sm:$0xf] %vm785, %v836
        %869 = vst.msk [vmem:[%s282 + $0xc] sm:$0xf] %vm785, %v837
        %870 = vst.msk [vmem:[%s282 + $0x10] sm:$0xf] %vm785, %v838
        %871 = vst.msk [vmem:[%s282 + $0x14] sm:$0xf] %vm785, %v839
        %872 = vst.msk [vmem:[%s282 + $0x18] sm:$0xf] %vm785, %v840
        %873 = vst.msk [vmem:[%s282 + $0x1c] sm:$0xf] %vm785, %v841
        %874 = vst.msk [vmem:[%s282 + $0x20] sm:$0xf] %vm785, %v842
        %875 = vst.msk [vmem:[%s282 + $0x24] sm:$0xf] %vm785, %v843
        %876 = vst.msk [vmem:[%s282 + $0x28] sm:$0xf] %vm785, %v844
        %877 = vst.msk [vmem:[%s282 + $0x2c] sm:$0xf] %vm785, %v845
        %878 = vst.msk [vmem:[%s282 + $0x30] sm:$0xf] %vm785, %v846
        %879 = vst.msk [vmem:[%s282 + $0x34] sm:$0xf] %vm785, %v847
        %880 = vst.msk [vmem:[%s282 + $0x38] sm:$0xf] %vm785, %v848
        %881 = vst.msk [vmem:[%s282 + $0x3c] sm:$0xf] %vm785, %v849
        %v882 = vpack.c.bf16 %v646, %v643
        %v883 = vpack.c.bf16 %v654, %v651
        %v884 = vpack.c.bf16 %v662, %v659
        %v885 = vpack.c.bf16 %v670, %v667
        %v886 = vpack.c.bf16 %v678, %v675
        %v887 = vpack.c.bf16 %v686, %v683
        %v888 = vpack.c.bf16 %v694, %v691
        %v889 = vpack.c.bf16 %v702, %v699
        %v898 = vunpack.c.l.b16 %v882
        %v899 = vunpack.c.h.b16 %v882
        %v900 = vunpack.c.l.b16 %v883
        %v901 = vunpack.c.h.b16 %v883
        %v902 = vunpack.c.l.b16 %v884
        %v903 = vunpack.c.h.b16 %v884
        %v904 = vunpack.c.l.b16 %v885
        %v905 = vunpack.c.h.b16 %v885
        %v906 = vunpack.c.l.b16 %v886
        %v907 = vunpack.c.h.b16 %v886
        %v908 = vunpack.c.l.b16 %v887
        %v909 = vunpack.c.h.b16 %v887
        %v910 = vunpack.c.l.b16 %v888
        %v911 = vunpack.c.h.b16 %v888
        %v912 = vunpack.c.l.b16 %v889
        %v913 = vunpack.c.h.b16 %v889
        %v914 = vpack.c.b16 %v898, %v898
        %v915 = vpack.c.b16 %v899, %v899
        %v916 = vpack.c.b16 %v900, %v900
        %v917 = vpack.c.b16 %v901, %v901
        %v918 = vpack.c.b16 %v902, %v902
        %v919 = vpack.c.b16 %v903, %v903
        %v920 = vpack.c.b16 %v904, %v904
        %v921 = vpack.c.b16 %v905, %v905
        %v922 = vpack.c.b16 %v906, %v906
        %v923 = vpack.c.b16 %v907, %v907
        %v924 = vpack.c.b16 %v908, %v908
        %v925 = vpack.c.b16 %v909, %v909
        %v926 = vpack.c.b16 %v910, %v910
        %v927 = vpack.c.b16 %v911, %v911
        %v928 = vpack.c.b16 %v912, %v912
        %v929 = vpack.c.b16 %v913, %v913
        %946 = vst.msk [vmem:[%s288] sm:$0xf] %vm785, %v914
        %947 = vst.msk [vmem:[%s288 + $0x4] sm:$0xf] %vm785, %v915
        %948 = vst.msk [vmem:[%s288 + $0x8] sm:$0xf] %vm785, %v916
        %949 = vst.msk [vmem:[%s288 + $0xc] sm:$0xf] %vm785, %v917
        %950 = vst.msk [vmem:[%s288 + $0x10] sm:$0xf] %vm785, %v918
        %951 = vst.msk [vmem:[%s288 + $0x14] sm:$0xf] %vm785, %v919
        %952 = vst.msk [vmem:[%s288 + $0x18] sm:$0xf] %vm785, %v920
        %953 = vst.msk [vmem:[%s288 + $0x1c] sm:$0xf] %vm785, %v921
        %954 = vst.msk [vmem:[%s288 + $0x20] sm:$0xf] %vm785, %v922
        %955 = vst.msk [vmem:[%s288 + $0x24] sm:$0xf] %vm785, %v923
        %956 = vst.msk [vmem:[%s288 + $0x28] sm:$0xf] %vm785, %v924
        %957 = vst.msk [vmem:[%s288 + $0x2c] sm:$0xf] %vm785, %v925
        %958 = vst.msk [vmem:[%s288 + $0x30] sm:$0xf] %vm785, %v926
        %959 = vst.msk [vmem:[%s288 + $0x34] sm:$0xf] %vm785, %v927
        %960 = vst.msk [vmem:[%s288 + $0x38] sm:$0xf] %vm785, %v928
        %961 = vst.msk [vmem:[%s288 + $0x3c] sm:$0xf] %vm785, %v929
        %962 = vrot.lane.b32.xlu0 %v753, 64
        %v963 = vpop.permute.xlu0 %962
        %964 = vrot.lane.b32.xlu0 %v754, 64
        %v965 = vpop.permute.xlu0 %964
        %966 = vrot.lane.b32.xlu0 %v755, 64
        %v967 = vpop.permute.xlu0 %966
        %968 = vrot.lane.b32.xlu0 %v756, 64
        %v969 = vpop.permute.xlu0 %968
        %970 = vrot.lane.b32.xlu0 %v757, 64
        %v971 = vpop.permute.xlu0 %970
        %972 = vrot.lane.b32.xlu0 %v758, 64
        %v973 = vpop.permute.xlu0 %972
        %974 = vrot.lane.b32.xlu0 %v759, 64
        %v975 = vpop.permute.xlu0 %974
        %976 = vrot.lane.b32.xlu0 %v760, 64
        %v977 = vpop.permute.xlu0 %976
        %978 = vrot.lane.b32.xlu0 %v761, 64
        %v979 = vpop.permute.xlu0 %978
        %980 = vrot.lane.b32.xlu0 %v762, 64
        %v981 = vpop.permute.xlu0 %980
        %982 = vrot.lane.b32.xlu0 %v763, 64
        %v983 = vpop.permute.xlu0 %982
        %984 = vrot.lane.b32.xlu0 %v764, 64
        %v985 = vpop.permute.xlu0 %984
        %986 = vrot.lane.b32.xlu0 %v765, 64
        %v987 = vpop.permute.xlu0 %986
        %988 = vrot.lane.b32.xlu0 %v766, 64
        %v989 = vpop.permute.xlu0 %988
        %990 = vrot.lane.b32.xlu0 %v767, 64
        %v991 = vpop.permute.xlu0 %990
        %992 = vrot.lane.b32.xlu0 %v768, 64
        %v993 = vpop.permute.xlu0 %992
        %s1010 = scalar_lea.vmem %s276, 64 [#allocation6]
        %1011 = vst.msk [vmem:[%s1010] sm:$0xf] %vm785, %v963
        %1012 = vst.msk [vmem:[%s1010 + $0x4] sm:$0xf] %vm785, %v965
        %1013 = vst.msk [vmem:[%s1010 + $0x8] sm:$0xf] %vm785, %v967
        %1014 = vst.msk [vmem:[%s1010 + $0xc] sm:$0xf] %vm785, %v969
        %1015 = vst.msk [vmem:[%s1010 + $0x10] sm:$0xf] %vm785, %v971
        %1016 = vst.msk [vmem:[%s1010 + $0x14] sm:$0xf] %vm785, %v973
        %1017 = vst.msk [vmem:[%s1010 + $0x18] sm:$0xf] %vm785, %v975
        %1018 = vst.msk [vmem:[%s1010 + $0x1c] sm:$0xf] %vm785, %v977
        %1019 = vst.msk [vmem:[%s1010 + $0x20] sm:$0xf] %vm785, %v979
        %1020 = vst.msk [vmem:[%s1010 + $0x24] sm:$0xf] %vm785, %v981
        %1021 = vst.msk [vmem:[%s1010 + $0x28] sm:$0xf] %vm785, %v983
        %1022 = vst.msk [vmem:[%s1010 + $0x2c] sm:$0xf] %vm785, %v985
        %1023 = vst.msk [vmem:[%s1010 + $0x30] sm:$0xf] %vm785, %v987
        %1024 = vst.msk [vmem:[%s1010 + $0x34] sm:$0xf] %vm785, %v989
        %1025 = vst.msk [vmem:[%s1010 + $0x38] sm:$0xf] %vm785, %v991
        %1026 = vst.msk [vmem:[%s1010 + $0x3c] sm:$0xf] %vm785, %v993
        %1027 = vrot.lane.b32.xlu0 %v834, 64
        %v1028 = vpop.permute.xlu0 %1027
        %1029 = vrot.lane.b32.xlu0 %v835, 64
        %v1030 = vpop.permute.xlu0 %1029
        %1031 = vrot.lane.b32.xlu0 %v836, 64
        %v1032 = vpop.permute.xlu0 %1031
        %1033 = vrot.lane.b32.xlu0 %v837, 64
        %v1034 = vpop.permute.xlu0 %1033
        %1035 = vrot.lane.b32.xlu0 %v838, 64
        %v1036 = vpop.permute.xlu0 %1035
        %1037 = vrot.lane.b32.xlu0 %v839, 64
        %v1038 = vpop.permute.xlu0 %1037
        %1039 = vrot.lane.b32.xlu0 %v840, 64
        %v1040 = vpop.permute.xlu0 %1039
        %1041 = vrot.lane.b32.xlu0 %v841, 64
        %v1042 = vpop.permute.xlu0 %1041
        %1043 = vrot.lane.b32.xlu0 %v842, 64
        %v1044 = vpop.permute.xlu0 %1043
        %1045 = vrot.lane.b32.xlu0 %v843, 64
        %v1046 = vpop.permute.xlu0 %1045
        %1047 = vrot.lane.b32.xlu0 %v844, 64
        %v1048 = vpop.permute.xlu0 %1047
        %1049 = vrot.lane.b32.xlu0 %v845, 64
        %v1050 = vpop.permute.xlu0 %1049
        %1051 = vrot.lane.b32.xlu0 %v846, 64
        %v1052 = vpop.permute.xlu0 %1051
        %1053 = vrot.lane.b32.xlu0 %v847, 64
        %v1054 = vpop.permute.xlu0 %1053
        %1055 = vrot.lane.b32.xlu0 %v848, 64
        %v1056 = vpop.permute.xlu0 %1055
        %1057 = vrot.lane.b32.xlu0 %v849, 64
        %v1058 = vpop.permute.xlu0 %1057
        %s1075 = scalar_lea.vmem %s282, 64 [#allocation7]
        %1076 = vst.msk [vmem:[%s1075] sm:$0xf] %vm785, %v1028
        %1077 = vst.msk [vmem:[%s1075 + $0x4] sm:$0xf] %vm785, %v1030
        %1078 = vst.msk [vmem:[%s1075 + $0x8] sm:$0xf] %vm785, %v1032
        %1079 = vst.msk [vmem:[%s1075 + $0xc] sm:$0xf] %vm785, %v1034
        %1080 = vst.msk [vmem:[%s1075 + $0x10] sm:$0xf] %vm785, %v1036
        %1081 = vst.msk [vmem:[%s1075 + $0x14] sm:$0xf] %vm785, %v1038
        %1082 = vst.msk [vmem:[%s1075 + $0x18] sm:$0xf] %vm785, %v1040
        %1083 = vst.msk [vmem:[%s1075 + $0x1c] sm:$0xf] %vm785, %v1042
        %1084 = vst.msk [vmem:[%s1075 + $0x20] sm:$0xf] %vm785, %v1044
        %1085 = vst.msk [vmem:[%s1075 + $0x24] sm:$0xf] %vm785, %v1046
        %1086 = vst.msk [vmem:[%s1075 + $0x28] sm:$0xf] %vm785, %v1048
        %1087 = vst.msk [vmem:[%s1075 + $0x2c] sm:$0xf] %vm785, %v1050
        %1088 = vst.msk [vmem:[%s1075 + $0x30] sm:$0xf] %vm785, %v1052
        %1089 = vst.msk [vmem:[%s1075 + $0x34] sm:$0xf] %vm785, %v1054
        %1090 = vst.msk [vmem:[%s1075 + $0x38] sm:$0xf] %vm785, %v1056
        %1091 = vst.msk [vmem:[%s1075 + $0x3c] sm:$0xf] %vm785, %v1058
        %1092 = vrot.lane.b32.xlu0 %v914, 64
        %v1093 = vpop.permute.xlu0 %1092
        %1094 = vrot.lane.b32.xlu0 %v915, 64
        %v1095 = vpop.permute.xlu0 %1094
        %1096 = vrot.lane.b32.xlu0 %v916, 64
        %v1097 = vpop.permute.xlu0 %1096
        %1098 = vrot.lane.b32.xlu0 %v917, 64
        %v1099 = vpop.permute.xlu0 %1098
        %1100 = vrot.lane.b32.xlu0 %v918, 64
        %v1101 = vpop.permute.xlu0 %1100
        %1102 = vrot.lane.b32.xlu0 %v919, 64
        %v1103 = vpop.permute.xlu0 %1102
        %1104 = vrot.lane.b32.xlu0 %v920, 64
        %v1105 = vpop.permute.xlu0 %1104
        %1106 = vrot.lane.b32.xlu0 %v921, 64
        %v1107 = vpop.permute.xlu0 %1106
        %1108 = vrot.lane.b32.xlu0 %v922, 64
        %v1109 = vpop.permute.xlu0 %1108
        %1110 = vrot.lane.b32.xlu0 %v923, 64
        %v1111 = vpop.permute.xlu0 %1110
        %1112 = vrot.lane.b32.xlu0 %v924, 64
        %v1113 = vpop.permute.xlu0 %1112
        %1114 = vrot.lane.b32.xlu0 %v925, 64
        %v1115 = vpop.permute.xlu0 %1114
        %1116 = vrot.lane.b32.xlu0 %v926, 64
        %v1117 = vpop.permute.xlu0 %1116
        %1118 = vrot.lane.b32.xlu0 %v927, 64
        %v1119 = vpop.permute.xlu0 %1118
        %1120 = vrot.lane.b32.xlu0 %v928, 64
        %v1121 = vpop.permute.xlu0 %1120
        %1122 = vrot.lane.b32.xlu0 %v929, 64
        %v1123 = vpop.permute.xlu0 %1122
        %s1140 = scalar_lea.vmem %s288, 64 [#allocation8]
        %1141 = vst.msk [vmem:[%s1140] sm:$0xf] %vm785, %v1093
        %1142 = vst.msk [vmem:[%s1140 + $0x4] sm:$0xf] %vm785, %v1095
        %1143 = vst.msk [vmem:[%s1140 + $0x8] sm:$0xf] %vm785, %v1097
        %1144 = vst.msk [vmem:[%s1140 + $0xc] sm:$0xf] %vm785, %v1099
        %1145 = vst.msk [vmem:[%s1140 + $0x10] sm:$0xf] %vm785, %v1101
        %1146 = vst.msk [vmem:[%s1140 + $0x14] sm:$0xf] %vm785, %v1103
        %1147 = vst.msk [vmem:[%s1140 + $0x18] sm:$0xf] %vm785, %v1105
        %1148 = vst.msk [vmem:[%s1140 + $0x1c] sm:$0xf] %vm785, %v1107
        %1149 = vst.msk [vmem:[%s1140 + $0x20] sm:$0xf] %vm785, %v1109
        %1150 = vst.msk [vmem:[%s1140 + $0x24] sm:$0xf] %vm785, %v1111
        %1151 = vst.msk [vmem:[%s1140 + $0x28] sm:$0xf] %vm785, %v1113
        %1152 = vst.msk [vmem:[%s1140 + $0x2c] sm:$0xf] %vm785, %v1115
        %1153 = vst.msk [vmem:[%s1140 + $0x30] sm:$0xf] %vm785, %v1117
        %1154 = vst.msk [vmem:[%s1140 + $0x34] sm:$0xf] %vm785, %v1119
        %1155 = vst.msk [vmem:[%s1140 + $0x38] sm:$0xf] %vm785, %v1121
        %1156 = vst.msk [vmem:[%s1140 + $0x3c] sm:$0xf] %vm785, %v1123
        %s1157 = sand.u32 %s113, 1
        %s1158 = sand.u32 %s113, 1
        %s1159 = smul.addr %s1158, 128
        %s1160 = scalar_lea.vmem [#allocation6], %s1159
        %s1161 = sand.u32 %s141, 1
        %s1162 = sand.u32 %s141, 1
        %s1163 = smul.addr %s1162, 128
        %s1164 = scalar_lea.vmem [#allocation7], %s1163
        %s1165 = sand.u32 %s169, 1
        %s1166 = sand.u32 %s169, 1
        %s1167 = smul.addr %s1166, 128
        %s1168 = scalar_lea.vmem [#allocation8], %s1167
        // Predicated region
        $region41: #{tpu_custom_call.1} parent=31 // pred_check
          %p1169 = pneg %p123
        $region42: #{tpu_custom_call.1} parent=31 // pred_check_branch
          %1171 = sbr.rel (%p1169) target = $region44
        $region43: #{tpu_custom_call.1} parent=31 // pred_region
          %s1172 = smul.u32 16, %s26
          %s1173 = smul.addr %s25, 64
          %s1174 = sadd.s32 %s1172, %s1173
          %s1175 = smul.addr %s1174, 4
          %s1176 = scalar_lea.vmem %s3, %s1175
          // Predicated region
          $region45: #{tpu_custom_call.1} parent=43 // pred_check
            _
          $region46: #{tpu_custom_call.1} parent=43 // pred_check_branch
            %1178 = sbr.rel (0) target = $region48
          $region47: #{tpu_custom_call.1} parent=43 // pred_region
            // Predicated region
            $region49: #{tpu_custom_call.1} parent=47 // pred_check
              _
            $region50: #{tpu_custom_call.1} parent=47 // pred_check_branch
              %1180 = sbr.rel target = $region52
            $region51: #{tpu_custom_call.1} parent=47 // pred_region
              // Predicated region
              $region64: #{tpu_custom_call.1} parent=51 // pred_check
                _
              $region65: #{tpu_custom_call.1} parent=51 // pred_check_branch
                %1257 = sbr.rel (0) target = $region67
              $region66: #{tpu_custom_call.1} parent=51 // pred_region
                loop: start=0, step=1, limit=1
                $region68: #{tpu_custom_call.1} parent=66 // loop_pre_header
                  _
                $region69: #{tpu_custom_call.1} parent=66 // loop_header
                  %s1259 = sphi 0, %s1263
                  %p1260 = scmp.ge.s32.totalorder %s1259, 1
                  %s1264 = sphi %s1160, %s1160
                  %s1265 = sphi %s1176, %s1176
                $region70: #{tpu_custom_call.1} parent=66 // loop_header_branch
                  %1262 = sbr.rel (%p1260) target = $region74
                $region71: #{tpu_custom_call.1} parent=66 // loop_body
                  _
                $region72: #{tpu_custom_call.1} parent=66 // loop_footer
                  %s1263 = sadd.s32 1, %s1259
                $region73: #{tpu_custom_call.1} parent=66 // loop_footer_branch
                  %1258 = sbr.rel target = $region69
                $region74: #{tpu_custom_call.1} parent=66 // loop_exit
                  _
                loop: start=0, step=1, limit=1
                $region75: #{tpu_custom_call.1} parent=66 // loop_pre_header
                  _
                $region76: #{tpu_custom_call.1} parent=66 // loop_header
                  %s1268 = sphi 0, %s1272
                  %p1269 = scmp.ge.s32.totalorder %s1268, 1
                  %s1273 = sphi %s1160, %s1160
                  %s1274 = sphi %s1176, %s1176
                $region77: #{tpu_custom_call.1} parent=66 // loop_header_branch
                  %1271 = sbr.rel (%p1269) target = $region81
                $region78: #{tpu_custom_call.1} parent=66 // loop_body
                  %v1275 = vld [vmem:[%s1273] sm:$0xf]
                  %1276 = vst [vmem:[%s1274] sm:$0xf] %v1275
                  %v1277 = vld [vmem:[%s1273 + $0x4] sm:$0xf]
                  %1278 = vst [vmem:[%s1274 + $0x4] sm:$0xf] %v1277
                  %v1279 = vld [vmem:[%s1273 + $0x8] sm:$0xf]
                  %1280 = vst [vmem:[%s1274 + $0x8] sm:$0xf] %v1279
                  %v1281 = vld [vmem:[%s1273 + $0xc] sm:$0xf]
                  %1282 = vst [vmem:[%s1274 + $0xc] sm:$0xf] %v1281
                  %v1283 = vld [vmem:[%s1273 + $0x10] sm:$0xf]
                  %1284 = vst [vmem:[%s1274 + $0x10] sm:$0xf] %v1283
                  %v1285 = vld [vmem:[%s1273 + $0x14] sm:$0xf]
                  %1286 = vst [vmem:[%s1274 + $0x14] sm:$0xf] %v1285
                  %v1287 = vld [vmem:[%s1273 + $0x18] sm:$0xf]
                  %1288 = vst [vmem:[%s1274 + $0x18] sm:$0xf] %v1287
                  %v1289 = vld [vmem:[%s1273 + $0x1c] sm:$0xf]
                  %1290 = vst [vmem:[%s1274 + $0x1c] sm:$0xf] %v1289
                  %v1291 = vld [vmem:[%s1273 + $0x20] sm:$0xf]
                  %1292 = vst [vmem:[%s1274 + $0x20] sm:$0xf] %v1291
                  %v1293 = vld [vmem:[%s1273 + $0x24] sm:$0xf]
                  %1294 = vst [vmem:[%s1274 + $0x24] sm:$0xf] %v1293
                  %v1295 = vld [vmem:[%s1273 + $0x28] sm:$0xf]
                  %1296 = vst [vmem:[%s1274 + $0x28] sm:$0xf] %v1295
                  %v1297 = vld [vmem:[%s1273 + $0x2c] sm:$0xf]
                  %1298 = vst [vmem:[%s1274 + $0x2c] sm:$0xf] %v1297
                  %v1299 = vld [vmem:[%s1273 + $0x30] sm:$0xf]
                  %1300 = vst [vmem:[%s1274 + $0x30] sm:$0xf] %v1299
                  %v1301 = vld [vmem:[%s1273 + $0x34] sm:$0xf]
                  %1302 = vst [vmem:[%s1274 + $0x34] sm:$0xf] %v1301
                  %v1303 = vld [vmem:[%s1273 + $0x38] sm:$0xf]
                  %1304 = vst [vmem:[%s1274 + $0x38] sm:$0xf] %v1303
                  %v1305 = vld [vmem:[%s1273 + $0x3c] sm:$0xf]
                  %1306 = vst [vmem:[%s1274 + $0x3c] sm:$0xf] %v1305
                  %v1307 = vld [vmem:[%s1273 + $0x40] sm:$0xf]
                  %1308 = vst [vmem:[%s1274 + $0x80] sm:$0xf] %v1307
                  %v1309 = vld [vmem:[%s1273 + $0x44] sm:$0xf]
                  %1310 = vst [vmem:[%s1274 + $0x84] sm:$0xf] %v1309
                  %v1311 = vld [vmem:[%s1273 + $0x48] sm:$0xf]
                  %1312 = vst [vmem:[%s1274 + $0x88] sm:$0xf] %v1311
                  %v1313 = vld [vmem:[%s1273 + $0x4c] sm:$0xf]
                  %1314 = vst [vmem:[%s1274 + $0x8c] sm:$0xf] %v1313
                  %v1315 = vld [vmem:[%s1273 + $0x50] sm:$0xf]
                  %1316 = vst [vmem:[%s1274 + $0x90] sm:$0xf] %v1315
                  %v1317 = vld [vmem:[%s1273 + $0x54] sm:$0xf]
                  %1318 = vst [vmem:[%s1274 + $0x94] sm:$0xf] %v1317
                  %v1319 = vld [vmem:[%s1273 + $0x58] sm:$0xf]
                  %1320 = vst [vmem:[%s1274 + $0x98] sm:$0xf] %v1319
                  %v1321 = vld [vmem:[%s1273 + $0x5c] sm:$0xf]
                  %1322 = vst [vmem:[%s1274 + $0x9c] sm:$0xf] %v1321
                  %v1323 = vld [vmem:[%s1273 + $0x60] sm:$0xf]
                  %1324 = vst [vmem:[%s1274 + $0xa0] sm:$0xf] %v1323
                  %v1325 = vld [vmem:[%s1273 + $0x64] sm:$0xf]
                  %1326 = vst [vmem:[%s1274 + $0xa4] sm:$0xf] %v1325
                  %v1327 = vld [vmem:[%s1273 + $0x68] sm:$0xf]
                  %1328 = vst [vmem:[%s1274 + $0xa8] sm:$0xf] %v1327
                  %v1329 = vld [vmem:[%s1273 + $0x6c] sm:$0xf]
                  %1330 = vst [vmem:[%s1274 + $0xac] sm:$0xf] %v1329
                  %v1331 = vld [vmem:[%s1273 + $0x70] sm:$0xf]
                  %1332 = vst [vmem:[%s1274 + $0xb0] sm:$0xf] %v1331
                  %v1333 = vld [vmem:[%s1273 + $0x74] sm:$0xf]
                  %1334 = vst [vmem:[%s1274 + $0xb4] sm:$0xf] %v1333
                  %v1335 = vld [vmem:[%s1273 + $0x78] sm:$0xf]
                  %1336 = vst [vmem:[%s1274 + $0xb8] sm:$0xf] %v1335
                  %v1337 = vld [vmem:[%s1273 + $0x7c] sm:$0xf]
                  %1338 = vst [vmem:[%s1274 + $0xbc] sm:$0xf] %v1337
                $region79: #{tpu_custom_call.1} parent=66 // loop_footer
                  %s1272 = sadd.s32 1, %s1268
                $region80: #{tpu_custom_call.1} parent=66 // loop_footer_branch
                  %1267 = sbr.rel target = $region76
                $region81: #{tpu_custom_call.1} parent=66 // loop_exit
                  _
              $region67: #{tpu_custom_call.1} parent=51 // pred_fallthru
                _
            $region52: #{tpu_custom_call.1} parent=47 // pred_fallthru
              _
            // Predicated region
            $region53: #{tpu_custom_call.1} parent=47 // pred_check
              _
            $region54: #{tpu_custom_call.1} parent=47 // pred_check_branch
              %1182 = sbr.rel (0) target = $region56
            $region55: #{tpu_custom_call.1} parent=47 // pred_region
              loop: start=0, step=1, limit=1
              $region57: #{tpu_custom_call.1} parent=55 // loop_pre_header
                _
              $region58: #{tpu_custom_call.1} parent=55 // loop_header
                %s1185 = sphi 0, %s1189
                %p1186 = scmp.ge.s32.totalorder %s1185, 1
                %s1190 = sphi %s1160, %s1160
                %s1191 = sphi %s1176, %s1176
              $region59: #{tpu_custom_call.1} parent=55 // loop_header_branch
                %1188 = sbr.rel (%p1186) target = $region63
              $region60: #{tpu_custom_call.1} parent=55 // loop_body
                %v1192 = vld [vmem:[%s1190] sm:$0xf]
                %1193 = vst [vmem:[%s1191] sm:$0xf] %v1192
                %v1194 = vld [vmem:[%s1190 + $0x4] sm:$0xf]
                %1195 = vst [vmem:[%s1191 + $0x4] sm:$0xf] %v1194
                %v1196 = vld [vmem:[%s1190 + $0x8] sm:$0xf]
                %1197 = vst [vmem:[%s1191 + $0x8] sm:$0xf] %v1196
                %v1198 = vld [vmem:[%s1190 + $0xc] sm:$0xf]
                %1199 = vst [vmem:[%s1191 + $0xc] sm:$0xf] %v1198
                %v1200 = vld [vmem:[%s1190 + $0x10] sm:$0xf]
                %1201 = vst [vmem:[%s1191 + $0x10] sm:$0xf] %v1200
                %v1202 = vld [vmem:[%s1190 + $0x14] sm:$0xf]
                %1203 = vst [vmem:[%s1191 + $0x14] sm:$0xf] %v1202
                %v1204 = vld [vmem:[%s1190 + $0x18] sm:$0xf]
                %1205 = vst [vmem:[%s1191 + $0x18] sm:$0xf] %v1204
                %v1206 = vld [vmem:[%s1190 + $0x1c] sm:$0xf]
                %1207 = vst [vmem:[%s1191 + $0x1c] sm:$0xf] %v1206
                %v1208 = vld [vmem:[%s1190 + $0x20] sm:$0xf]
                %1209 = vst [vmem:[%s1191 + $0x20] sm:$0xf] %v1208
                %v1210 = vld [vmem:[%s1190 + $0x24] sm:$0xf]
                %1211 = vst [vmem:[%s1191 + $0x24] sm:$0xf] %v1210
                %v1212 = vld [vmem:[%s1190 + $0x28] sm:$0xf]
                %1213 = vst [vmem:[%s1191 + $0x28] sm:$0xf] %v1212
                %v1214 = vld [vmem:[%s1190 + $0x2c] sm:$0xf]
                %1215 = vst [vmem:[%s1191 + $0x2c] sm:$0xf] %v1214
                %v1216 = vld [vmem:[%s1190 + $0x30] sm:$0xf]
                %1217 = vst [vmem:[%s1191 + $0x30] sm:$0xf] %v1216
                %v1218 = vld [vmem:[%s1190 + $0x34] sm:$0xf]
                %1219 = vst [vmem:[%s1191 + $0x34] sm:$0xf] %v1218
                %v1220 = vld [vmem:[%s1190 + $0x38] sm:$0xf]
                %1221 = vst [vmem:[%s1191 + $0x38] sm:$0xf] %v1220
                %v1222 = vld [vmem:[%s1190 + $0x3c] sm:$0xf]
                %1223 = vst [vmem:[%s1191 + $0x3c] sm:$0xf] %v1222
                %v1224 = vld [vmem:[%s1190 + $0x40] sm:$0xf]
                %1225 = vst [vmem:[%s1191 + $0x80] sm:$0xf] %v1224
                %v1226 = vld [vmem:[%s1190 + $0x44] sm:$0xf]
                %1227 = vst [vmem:[%s1191 + $0x84] sm:$0xf] %v1226
                %v1228 = vld [vmem:[%s1190 + $0x48] sm:$0xf]
                %1229 = vst [vmem:[%s1191 + $0x88] sm:$0xf] %v1228
                %v1230 = vld [vmem:[%s1190 + $0x4c] sm:$0xf]
                %1231 = vst [vmem:[%s1191 + $0x8c] sm:$0xf] %v1230
                %v1232 = vld [vmem:[%s1190 + $0x50] sm:$0xf]
                %1233 = vst [vmem:[%s1191 + $0x90] sm:$0xf] %v1232
                %v1234 = vld [vmem:[%s1190 + $0x54] sm:$0xf]
                %1235 = vst [vmem:[%s1191 + $0x94] sm:$0xf] %v1234
                %v1236 = vld [vmem:[%s1190 + $0x58] sm:$0xf]
                %1237 = vst [vmem:[%s1191 + $0x98] sm:$0xf] %v1236
                %v1238 = vld [vmem:[%s1190 + $0x5c] sm:$0xf]
                %1239 = vst [vmem:[%s1191 + $0x9c] sm:$0xf] %v1238
                %v1240 = vld [vmem:[%s1190 + $0x60] sm:$0xf]
                %1241 = vst [vmem:[%s1191 + $0xa0] sm:$0xf] %v1240
                %v1242 = vld [vmem:[%s1190 + $0x64] sm:$0xf]
                %1243 = vst [vmem:[%s1191 + $0xa4] sm:$0xf] %v1242
                %v1244 = vld [vmem:[%s1190 + $0x68] sm:$0xf]
                %1245 = vst [vmem:[%s1191 + $0xa8] sm:$0xf] %v1244
                %v1246 = vld [vmem:[%s1190 + $0x6c] sm:$0xf]
                %1247 = vst [vmem:[%s1191 + $0xac] sm:$0xf] %v1246
                %v1248 = vld [vmem:[%s1190 + $0x70] sm:$0xf]
                %1249 = vst [vmem:[%s1191 + $0xb0] sm:$0xf] %v1248
                %v1250 = vld [vmem:[%s1190 + $0x74] sm:$0xf]
                %1251 = vst [vmem:[%s1191 + $0xb4] sm:$0xf] %v1250
                %v1252 = vld [vmem:[%s1190 + $0x78] sm:$0xf]
                %1253 = vst [vmem:[%s1191 + $0xb8] sm:$0xf] %v1252
                %v1254 = vld [vmem:[%s1190 + $0x7c] sm:$0xf]
                %1255 = vst [vmem:[%s1191 + $0xbc] sm:$0xf] %v1254
              $region61: #{tpu_custom_call.1} parent=55 // loop_footer
                %s1189 = sadd.s32 1, %s1185
              $region62: #{tpu_custom_call.1} parent=55 // loop_footer_branch
                %1184 = sbr.rel target = $region58
              $region63: #{tpu_custom_call.1} parent=55 // loop_exit
                _
            $region56: #{tpu_custom_call.1} parent=47 // pred_fallthru
              _
          $region48: #{tpu_custom_call.1} parent=43 // pred_fallthru
            _
          %1339 = vnop
        $region44: #{tpu_custom_call.1} parent=31 // pred_fallthru
          _
        // Predicated region
        $region82: #{tpu_custom_call.1} parent=31 // pred_check
          %p1340 = pneg %p151
        $region83: #{tpu_custom_call.1} parent=31 // pred_check_branch
          %1342 = sbr.rel (%p1340) target = $region85
        $region84: #{tpu_custom_call.1} parent=31 // pred_region
          %s1343 = smul.u32 16, %s26
          %s1344 = smul.addr %s25, 64
          %s1345 = sadd.s32 %s1343, %s1344
          %s1346 = smul.addr %s1345, 4
          %s1347 = scalar_lea.vmem %s4, %s1346
          // Predicated region
          $region86: #{tpu_custom_call.1} parent=84 // pred_check
            _
          $region87: #{tpu_custom_call.1} parent=84 // pred_check_branch
            %1349 = sbr.rel (0) target = $region89
          $region88: #{tpu_custom_call.1} parent=84 // pred_region
            // Predicated region
            $region90: #{tpu_custom_call.1} parent=88 // pred_check
              _
            $region91: #{tpu_custom_call.1} parent=88 // pred_check_branch
              %1351 = sbr.rel target = $region93
            $region92: #{tpu_custom_call.1} parent=88 // pred_region
              // Predicated region
              $region105: #{tpu_custom_call.1} parent=92 // pred_check
                _
              $region106: #{tpu_custom_call.1} parent=92 // pred_check_branch
                %1428 = sbr.rel (0) target = $region108
              $region107: #{tpu_custom_call.1} parent=92 // pred_region
                loop: start=0, step=1, limit=1
                $region109: #{tpu_custom_call.1} parent=107 // loop_pre_header
                  _
                $region110: #{tpu_custom_call.1} parent=107 // loop_header
                  %s1430 = sphi 0, %s1434
                  %p1431 = scmp.ge.s32.totalorder %s1430, 1
                  %s1435 = sphi %s1164, %s1164
                  %s1436 = sphi %s1347, %s1347
                $region111: #{tpu_custom_call.1} parent=107 // loop_header_branch
                  %1433 = sbr.rel (%p1431) target = $region115
                $region112: #{tpu_custom_call.1} parent=107 // loop_body
                  _
                $region113: #{tpu_custom_call.1} parent=107 // loop_footer
                  %s1434 = sadd.s32 1, %s1430
                $region114: #{tpu_custom_call.1} parent=107 // loop_footer_branch
                  %1429 = sbr.rel target = $region110
                $region115: #{tpu_custom_call.1} parent=107 // loop_exit
                  _
                loop: start=0, step=1, limit=1
                $region116: #{tpu_custom_call.1} parent=107 // loop_pre_header
                  _
                $region117: #{tpu_custom_call.1} parent=107 // loop_header
                  %s1439 = sphi 0, %s1443
                  %p1440 = scmp.ge.s32.totalorder %s1439, 1
                  %s1444 = sphi %s1164, %s1164
                  %s1445 = sphi %s1347, %s1347
                $region118: #{tpu_custom_call.1} parent=107 // loop_header_branch
                  %1442 = sbr.rel (%p1440) target = $region122
                $region119: #{tpu_custom_call.1} parent=107 // loop_body
                  %v1446 = vld [vmem:[%s1444] sm:$0xf]
                  %1447 = vst [vmem:[%s1445] sm:$0xf] %v1446
                  %v1448 = vld [vmem:[%s1444 + $0x4] sm:$0xf]
                  %1449 = vst [vmem:[%s1445 + $0x4] sm:$0xf] %v1448
                  %v1450 = vld [vmem:[%s1444 + $0x8] sm:$0xf]
                  %1451 = vst [vmem:[%s1445 + $0x8] sm:$0xf] %v1450
                  %v1452 = vld [vmem:[%s1444 + $0xc] sm:$0xf]
                  %1453 = vst [vmem:[%s1445 + $0xc] sm:$0xf] %v1452
                  %v1454 = vld [vmem:[%s1444 + $0x10] sm:$0xf]
                  %1455 = vst [vmem:[%s1445 + $0x10] sm:$0xf] %v1454
                  %v1456 = vld [vmem:[%s1444 + $0x14] sm:$0xf]
                  %1457 = vst [vmem:[%s1445 + $0x14] sm:$0xf] %v1456
                  %v1458 = vld [vmem:[%s1444 + $0x18] sm:$0xf]
                  %1459 = vst [vmem:[%s1445 + $0x18] sm:$0xf] %v1458
                  %v1460 = vld [vmem:[%s1444 + $0x1c] sm:$0xf]
                  %1461 = vst [vmem:[%s1445 + $0x1c] sm:$0xf] %v1460
                  %v1462 = vld [vmem:[%s1444 + $0x20] sm:$0xf]
                  %1463 = vst [vmem:[%s1445 + $0x20] sm:$0xf] %v1462
                  %v1464 = vld [vmem:[%s1444 + $0x24] sm:$0xf]
                  %1465 = vst [vmem:[%s1445 + $0x24] sm:$0xf] %v1464
                  %v1466 = vld [vmem:[%s1444 + $0x28] sm:$0xf]
                  %1467 = vst [vmem:[%s1445 + $0x28] sm:$0xf] %v1466
                  %v1468 = vld [vmem:[%s1444 + $0x2c] sm:$0xf]
                  %1469 = vst [vmem:[%s1445 + $0x2c] sm:$0xf] %v1468
                  %v1470 = vld [vmem:[%s1444 + $0x30] sm:$0xf]
                  %1471 = vst [vmem:[%s1445 + $0x30] sm:$0xf] %v1470
                  %v1472 = vld [vmem:[%s1444 + $0x34] sm:$0xf]
                  %1473 = vst [vmem:[%s1445 + $0x34] sm:$0xf] %v1472
                  %v1474 = vld [vmem:[%s1444 + $0x38] sm:$0xf]
                  %1475 = vst [vmem:[%s1445 + $0x38] sm:$0xf] %v1474
                  %v1476 = vld [vmem:[%s1444 + $0x3c] sm:$0xf]
                  %1477 = vst [vmem:[%s1445 + $0x3c] sm:$0xf] %v1476
                  %v1478 = vld [vmem:[%s1444 + $0x40] sm:$0xf]
                  %1479 = vst [vmem:[%s1445 + $0x80] sm:$0xf] %v1478
                  %v1480 = vld [vmem:[%s1444 + $0x44] sm:$0xf]
                  %1481 = vst [vmem:[%s1445 + $0x84] sm:$0xf] %v1480
                  %v1482 = vld [vmem:[%s1444 + $0x48] sm:$0xf]
                  %1483 = vst [vmem:[%s1445 + $0x88] sm:$0xf] %v1482
                  %v1484 = vld [vmem:[%s1444 + $0x4c] sm:$0xf]
                  %1485 = vst [vmem:[%s1445 + $0x8c] sm:$0xf] %v1484
                  %v1486 = vld [vmem:[%s1444 + $0x50] sm:$0xf]
                  %1487 = vst [vmem:[%s1445 + $0x90] sm:$0xf] %v1486
                  %v1488 = vld [vmem:[%s1444 + $0x54] sm:$0xf]
                  %1489 = vst [vmem:[%s1445 + $0x94] sm:$0xf] %v1488
                  %v1490 = vld [vmem:[%s1444 + $0x58] sm:$0xf]
                  %1491 = vst [vmem:[%s1445 + $0x98] sm:$0xf] %v1490
                  %v1492 = vld [vmem:[%s1444 + $0x5c] sm:$0xf]
                  %1493 = vst [vmem:[%s1445 + $0x9c] sm:$0xf] %v1492
                  %v1494 = vld [vmem:[%s1444 + $0x60] sm:$0xf]
                  %1495 = vst [vmem:[%s1445 + $0xa0] sm:$0xf] %v1494
                  %v1496 = vld [vmem:[%s1444 + $0x64] sm:$0xf]
                  %1497 = vst [vmem:[%s1445 + $0xa4] sm:$0xf] %v1496
                  %v1498 = vld [vmem:[%s1444 + $0x68] sm:$0xf]
                  %1499 = vst [vmem:[%s1445 + $0xa8] sm:$0xf] %v1498
                  %v1500 = vld [vmem:[%s1444 + $0x6c] sm:$0xf]
                  %1501 = vst [vmem:[%s1445 + $0xac] sm:$0xf] %v1500
                  %v1502 = vld [vmem:[%s1444 + $0x70] sm:$0xf]
                  %1503 = vst [vmem:[%s1445 + $0xb0] sm:$0xf] %v1502
                  %v1504 = vld [vmem:[%s1444 + $0x74] sm:$0xf]
                  %1505 = vst [vmem:[%s1445 + $0xb4] sm:$0xf] %v1504
                  %v1506 = vld [vmem:[%s1444 + $0x78] sm:$0xf]
                  %1507 = vst [vmem:[%s1445 + $0xb8] sm:$0xf] %v1506
                  %v1508 = vld [vmem:[%s1444 + $0x7c] sm:$0xf]
                  %1509 = vst [vmem:[%s1445 + $0xbc] sm:$0xf] %v1508
                $region120: #{tpu_custom_call.1} parent=107 // loop_footer
                  %s1443 = sadd.s32 1, %s1439
                $region121: #{tpu_custom_call.1} parent=107 // loop_footer_branch
                  %1438 = sbr.rel target = $region117
                $region122: #{tpu_custom_call.1} parent=107 // loop_exit
                  _
              $region108: #{tpu_custom_call.1} parent=92 // pred_fallthru
                _
            $region93: #{tpu_custom_call.1} parent=88 // pred_fallthru
              _
            // Predicated region
            $region94: #{tpu_custom_call.1} parent=88 // pred_check
              _
            $region95: #{tpu_custom_call.1} parent=88 // pred_check_branch
              %1353 = sbr.rel (0) target = $region97
            $region96: #{tpu_custom_call.1} parent=88 // pred_region
              loop: start=0, step=1, limit=1
              $region98: #{tpu_custom_call.1} parent=96 // loop_pre_header
                _
              $region99: #{tpu_custom_call.1} parent=96 // loop_header
                %s1356 = sphi 0, %s1360
                %p1357 = scmp.ge.s32.totalorder %s1356, 1
                %s1361 = sphi %s1164, %s1164
                %s1362 = sphi %s1347, %s1347
              $region100: #{tpu_custom_call.1} parent=96 // loop_header_branch
                %1359 = sbr.rel (%p1357) target = $region104
              $region101: #{tpu_custom_call.1} parent=96 // loop_body
                %v1363 = vld [vmem:[%s1361] sm:$0xf]
                %1364 = vst [vmem:[%s1362] sm:$0xf] %v1363
                %v1365 = vld [vmem:[%s1361 + $0x4] sm:$0xf]
                %1366 = vst [vmem:[%s1362 + $0x4] sm:$0xf] %v1365
                %v1367 = vld [vmem:[%s1361 + $0x8] sm:$0xf]
                %1368 = vst [vmem:[%s1362 + $0x8] sm:$0xf] %v1367
                %v1369 = vld [vmem:[%s1361 + $0xc] sm:$0xf]
                %1370 = vst [vmem:[%s1362 + $0xc] sm:$0xf] %v1369
                %v1371 = vld [vmem:[%s1361 + $0x10] sm:$0xf]
                %1372 = vst [vmem:[%s1362 + $0x10] sm:$0xf] %v1371
                %v1373 = vld [vmem:[%s1361 + $0x14] sm:$0xf]
                %1374 = vst [vmem:[%s1362 + $0x14] sm:$0xf] %v1373
                %v1375 = vld [vmem:[%s1361 + $0x18] sm:$0xf]
                %1376 = vst [vmem:[%s1362 + $0x18] sm:$0xf] %v1375
                %v1377 = vld [vmem:[%s1361 + $0x1c] sm:$0xf]
                %1378 = vst [vmem:[%s1362 + $0x1c] sm:$0xf] %v1377
                %v1379 = vld [vmem:[%s1361 + $0x20] sm:$0xf]
                %1380 = vst [vmem:[%s1362 + $0x20] sm:$0xf] %v1379
                %v1381 = vld [vmem:[%s1361 + $0x24] sm:$0xf]
                %1382 = vst [vmem:[%s1362 + $0x24] sm:$0xf] %v1381
                %v1383 = vld [vmem:[%s1361 + $0x28] sm:$0xf]
                %1384 = vst [vmem:[%s1362 + $0x28] sm:$0xf] %v1383
                %v1385 = vld [vmem:[%s1361 + $0x2c] sm:$0xf]
                %1386 = vst [vmem:[%s1362 + $0x2c] sm:$0xf] %v1385
                %v1387 = vld [vmem:[%s1361 + $0x30] sm:$0xf]
                %1388 = vst [vmem:[%s1362 + $0x30] sm:$0xf] %v1387
                %v1389 = vld [vmem:[%s1361 + $0x34] sm:$0xf]
                %1390 = vst [vmem:[%s1362 + $0x34] sm:$0xf] %v1389
                %v1391 = vld [vmem:[%s1361 + $0x38] sm:$0xf]
                %1392 = vst [vmem:[%s1362 + $0x38] sm:$0xf] %v1391
                %v1393 = vld [vmem:[%s1361 + $0x3c] sm:$0xf]
                %1394 = vst [vmem:[%s1362 + $0x3c] sm:$0xf] %v1393
                %v1395 = vld [vmem:[%s1361 + $0x40] sm:$0xf]
                %1396 = vst [vmem:[%s1362 + $0x80] sm:$0xf] %v1395
                %v1397 = vld [vmem:[%s1361 + $0x44] sm:$0xf]
                %1398 = vst [vmem:[%s1362 + $0x84] sm:$0xf] %v1397
                %v1399 = vld [vmem:[%s1361 + $0x48] sm:$0xf]
                %1400 = vst [vmem:[%s1362 + $0x88] sm:$0xf] %v1399
                %v1401 = vld [vmem:[%s1361 + $0x4c] sm:$0xf]
                %1402 = vst [vmem:[%s1362 + $0x8c] sm:$0xf] %v1401
                %v1403 = vld [vmem:[%s1361 + $0x50] sm:$0xf]
                %1404 = vst [vmem:[%s1362 + $0x90] sm:$0xf] %v1403
                %v1405 = vld [vmem:[%s1361 + $0x54] sm:$0xf]
                %1406 = vst [vmem:[%s1362 + $0x94] sm:$0xf] %v1405
                %v1407 = vld [vmem:[%s1361 + $0x58] sm:$0xf]
                %1408 = vst [vmem:[%s1362 + $0x98] sm:$0xf] %v1407
                %v1409 = vld [vmem:[%s1361 + $0x5c] sm:$0xf]
                %1410 = vst [vmem:[%s1362 + $0x9c] sm:$0xf] %v1409
                %v1411 = vld [vmem:[%s1361 + $0x60] sm:$0xf]
                %1412 = vst [vmem:[%s1362 + $0xa0] sm:$0xf] %v1411
                %v1413 = vld [vmem:[%s1361 + $0x64] sm:$0xf]
                %1414 = vst [vmem:[%s1362 + $0xa4] sm:$0xf] %v1413
                %v1415 = vld [vmem:[%s1361 + $0x68] sm:$0xf]
                %1416 = vst [vmem:[%s1362 + $0xa8] sm:$0xf] %v1415
                %v1417 = vld [vmem:[%s1361 + $0x6c] sm:$0xf]
                %1418 = vst [vmem:[%s1362 + $0xac] sm:$0xf] %v1417
                %v1419 = vld [vmem:[%s1361 + $0x70] sm:$0xf]
                %1420 = vst [vmem:[%s1362 + $0xb0] sm:$0xf] %v1419
                %v1421 = vld [vmem:[%s1361 + $0x74] sm:$0xf]
                %1422 = vst [vmem:[%s1362 + $0xb4] sm:$0xf] %v1421
                %v1423 = vld [vmem:[%s1361 + $0x78] sm:$0xf]
                %1424 = vst [vmem:[%s1362 + $0xb8] sm:$0xf] %v1423
                %v1425 = vld [vmem:[%s1361 + $0x7c] sm:$0xf]
                %1426 = vst [vmem:[%s1362 + $0xbc] sm:$0xf] %v1425
              $region102: #{tpu_custom_call.1} parent=96 // loop_footer
                %s1360 = sadd.s32 1, %s1356
              $region103: #{tpu_custom_call.1} parent=96 // loop_footer_branch
                %1355 = sbr.rel target = $region99
              $region104: #{tpu_custom_call.1} parent=96 // loop_exit
                _
            $region97: #{tpu_custom_call.1} parent=88 // pred_fallthru
              _
          $region89: #{tpu_custom_call.1} parent=84 // pred_fallthru
            _
          %1510 = vnop
        $region85: #{tpu_custom_call.1} parent=31 // pred_fallthru
          _
        // Predicated region
        $region123: #{tpu_custom_call.1} parent=31 // pred_check
          %p1511 = pneg %p179
        $region124: #{tpu_custom_call.1} parent=31 // pred_check_branch
          %1513 = sbr.rel (%p1511) target = $region126
        $region125: #{tpu_custom_call.1} parent=31 // pred_region
          %s1514 = smul.u32 16, %s26
          %s1515 = smul.addr %s25, 64
          %s1516 = sadd.s32 %s1514, %s1515
          %s1517 = smul.addr %s1516, 4
          %s1518 = scalar_lea.vmem %s5, %s1517
          // Predicated region
          $region127: #{tpu_custom_call.1} parent=125 // pred_check
            _
          $region128: #{tpu_custom_call.1} parent=125 // pred_check_branch
            %1520 = sbr.rel (0) target = $region130
          $region129: #{tpu_custom_call.1} parent=125 // pred_region
            // Predicated region
            $region131: #{tpu_custom_call.1} parent=129 // pred_check
              _
            $region132: #{tpu_custom_call.1} parent=129 // pred_check_branch
              %1522 = sbr.rel target = $region134
            $region133: #{tpu_custom_call.1} parent=129 // pred_region
              // Predicated region
              $region146: #{tpu_custom_call.1} parent=133 // pred_check
                _
              $region147: #{tpu_custom_call.1} parent=133 // pred_check_branch
                %1599 = sbr.rel (0) target = $region149
              $region148: #{tpu_custom_call.1} parent=133 // pred_region
                loop: start=0, step=1, limit=1
                $region150: #{tpu_custom_call.1} parent=148 // loop_pre_header
                  _
                $region151: #{tpu_custom_call.1} parent=148 // loop_header
                  %s1601 = sphi 0, %s1605
                  %p1602 = scmp.ge.s32.totalorder %s1601, 1
                  %s1606 = sphi %s1168, %s1168
                  %s1607 = sphi %s1518, %s1518
                $region152: #{tpu_custom_call.1} parent=148 // loop_header_branch
                  %1604 = sbr.rel (%p1602) target = $region156
                $region153: #{tpu_custom_call.1} parent=148 // loop_body
                  _
                $region154: #{tpu_custom_call.1} parent=148 // loop_footer
                  %s1605 = sadd.s32 1, %s1601
                $region155: #{tpu_custom_call.1} parent=148 // loop_footer_branch
                  %1600 = sbr.rel target = $region151
                $region156: #{tpu_custom_call.1} parent=148 // loop_exit
                  _
                loop: start=0, step=1, limit=1
                $region157: #{tpu_custom_call.1} parent=148 // loop_pre_header
                  _
                $region158: #{tpu_custom_call.1} parent=148 // loop_header
                  %s1610 = sphi 0, %s1614
                  %p1611 = scmp.ge.s32.totalorder %s1610, 1
                  %s1615 = sphi %s1168, %s1168
                  %s1616 = sphi %s1518, %s1518
                $region159: #{tpu_custom_call.1} parent=148 // loop_header_branch
                  %1613 = sbr.rel (%p1611) target = $region163
                $region160: #{tpu_custom_call.1} parent=148 // loop_body
                  %v1617 = vld [vmem:[%s1615] sm:$0xf]
                  %1618 = vst [vmem:[%s1616] sm:$0xf] %v1617
                  %v1619 = vld [vmem:[%s1615 + $0x4] sm:$0xf]
                  %1620 = vst [vmem:[%s1616 + $0x4] sm:$0xf] %v1619
                  %v1621 = vld [vmem:[%s1615 + $0x8] sm:$0xf]
                  %1622 = vst [vmem:[%s1616 + $0x8] sm:$0xf] %v1621
                  %v1623 = vld [vmem:[%s1615 + $0xc] sm:$0xf]
                  %1624 = vst [vmem:[%s1616 + $0xc] sm:$0xf] %v1623
                  %v1625 = vld [vmem:[%s1615 + $0x10] sm:$0xf]
                  %1626 = vst [vmem:[%s1616 + $0x10] sm:$0xf] %v1625
                  %v1627 = vld [vmem:[%s1615 + $0x14] sm:$0xf]
                  %1628 = vst [vmem:[%s1616 + $0x14] sm:$0xf] %v1627
                  %v1629 = vld [vmem:[%s1615 + $0x18] sm:$0xf]
                  %1630 = vst [vmem:[%s1616 + $0x18] sm:$0xf] %v1629
                  %v1631 = vld [vmem:[%s1615 + $0x1c] sm:$0xf]
                  %1632 = vst [vmem:[%s1616 + $0x1c] sm:$0xf] %v1631
                  %v1633 = vld [vmem:[%s1615 + $0x20] sm:$0xf]
                  %1634 = vst [vmem:[%s1616 + $0x20] sm:$0xf] %v1633
                  %v1635 = vld [vmem:[%s1615 + $0x24] sm:$0xf]
                  %1636 = vst [vmem:[%s1616 + $0x24] sm:$0xf] %v1635
                  %v1637 = vld [vmem:[%s1615 + $0x28] sm:$0xf]
                  %1638 = vst [vmem:[%s1616 + $0x28] sm:$0xf] %v1637
                  %v1639 = vld [vmem:[%s1615 + $0x2c] sm:$0xf]
                  %1640 = vst [vmem:[%s1616 + $0x2c] sm:$0xf] %v1639
                  %v1641 = vld [vmem:[%s1615 + $0x30] sm:$0xf]
                  %1642 = vst [vmem:[%s1616 + $0x30] sm:$0xf] %v1641
                  %v1643 = vld [vmem:[%s1615 + $0x34] sm:$0xf]
                  %1644 = vst [vmem:[%s1616 + $0x34] sm:$0xf] %v1643
                  %v1645 = vld [vmem:[%s1615 + $0x38] sm:$0xf]
                  %1646 = vst [vmem:[%s1616 + $0x38] sm:$0xf] %v1645
                  %v1647 = vld [vmem:[%s1615 + $0x3c] sm:$0xf]
                  %1648 = vst [vmem:[%s1616 + $0x3c] sm:$0xf] %v1647
                  %v1649 = vld [vmem:[%s1615 + $0x40] sm:$0xf]
                  %1650 = vst [vmem:[%s1616 + $0x80] sm:$0xf] %v1649
                  %v1651 = vld [vmem:[%s1615 + $0x44] sm:$0xf]
                  %1652 = vst [vmem:[%s1616 + $0x84] sm:$0xf] %v1651
                  %v1653 = vld [vmem:[%s1615 + $0x48] sm:$0xf]
                  %1654 = vst [vmem:[%s1616 + $0x88] sm:$0xf] %v1653
                  %v1655 = vld [vmem:[%s1615 + $0x4c] sm:$0xf]
                  %1656 = vst [vmem:[%s1616 + $0x8c] sm:$0xf] %v1655
                  %v1657 = vld [vmem:[%s1615 + $0x50] sm:$0xf]
                  %1658 = vst [vmem:[%s1616 + $0x90] sm:$0xf] %v1657
                  %v1659 = vld [vmem:[%s1615 + $0x54] sm:$0xf]
                  %1660 = vst [vmem:[%s1616 + $0x94] sm:$0xf] %v1659
                  %v1661 = vld [vmem:[%s1615 + $0x58] sm:$0xf]
                  %1662 = vst [vmem:[%s1616 + $0x98] sm:$0xf] %v1661
                  %v1663 = vld [vmem:[%s1615 + $0x5c] sm:$0xf]
                  %1664 = vst [vmem:[%s1616 + $0x9c] sm:$0xf] %v1663
                  %v1665 = vld [vmem:[%s1615 + $0x60] sm:$0xf]
                  %1666 = vst [vmem:[%s1616 + $0xa0] sm:$0xf] %v1665
                  %v1667 = vld [vmem:[%s1615 + $0x64] sm:$0xf]
                  %1668 = vst [vmem:[%s1616 + $0xa4] sm:$0xf] %v1667
                  %v1669 = vld [vmem:[%s1615 + $0x68] sm:$0xf]
                  %1670 = vst [vmem:[%s1616 + $0xa8] sm:$0xf] %v1669
                  %v1671 = vld [vmem:[%s1615 + $0x6c] sm:$0xf]
                  %1672 = vst [vmem:[%s1616 + $0xac] sm:$0xf] %v1671
                  %v1673 = vld [vmem:[%s1615 + $0x70] sm:$0xf]
                  %1674 = vst [vmem:[%s1616 + $0xb0] sm:$0xf] %v1673
                  %v1675 = vld [vmem:[%s1615 + $0x74] sm:$0xf]
                  %1676 = vst [vmem:[%s1616 + $0xb4] sm:$0xf] %v1675
                  %v1677 = vld [vmem:[%s1615 + $0x78] sm:$0xf]
                  %1678 = vst [vmem:[%s1616 + $0xb8] sm:$0xf] %v1677
                  %v1679 = vld [vmem:[%s1615 + $0x7c] sm:$0xf]
                  %1680 = vst [vmem:[%s1616 + $0xbc] sm:$0xf] %v1679
                $region161: #{tpu_custom_call.1} parent=148 // loop_footer
                  %s1614 = sadd.s32 1, %s1610
                $region162: #{tpu_custom_call.1} parent=148 // loop_footer_branch
                  %1609 = sbr.rel target = $region158
                $region163: #{tpu_custom_call.1} parent=148 // loop_exit
                  _
              $region149: #{tpu_custom_call.1} parent=133 // pred_fallthru
                _
            $region134: #{tpu_custom_call.1} parent=129 // pred_fallthru
              _
            // Predicated region
            $region135: #{tpu_custom_call.1} parent=129 // pred_check
              _
            $region136: #{tpu_custom_call.1} parent=129 // pred_check_branch
              %1524 = sbr.rel (0) target = $region138
            $region137: #{tpu_custom_call.1} parent=129 // pred_region
              loop: start=0, step=1, limit=1
              $region139: #{tpu_custom_call.1} parent=137 // loop_pre_header
                _
              $region140: #{tpu_custom_call.1} parent=137 // loop_header
                %s1527 = sphi 0, %s1531
                %p1528 = scmp.ge.s32.totalorder %s1527, 1
                %s1532 = sphi %s1168, %s1168
                %s1533 = sphi %s1518, %s1518
              $region141: #{tpu_custom_call.1} parent=137 // loop_header_branch
                %1530 = sbr.rel (%p1528) target = $region145
              $region142: #{tpu_custom_call.1} parent=137 // loop_body
                %v1534 = vld [vmem:[%s1532] sm:$0xf]
                %1535 = vst [vmem:[%s1533] sm:$0xf] %v1534
                %v1536 = vld [vmem:[%s1532 + $0x4] sm:$0xf]
                %1537 = vst [vmem:[%s1533 + $0x4] sm:$0xf] %v1536
                %v1538 = vld [vmem:[%s1532 + $0x8] sm:$0xf]
                %1539 = vst [vmem:[%s1533 + $0x8] sm:$0xf] %v1538
                %v1540 = vld [vmem:[%s1532 + $0xc] sm:$0xf]
                %1541 = vst [vmem:[%s1533 + $0xc] sm:$0xf] %v1540
                %v1542 = vld [vmem:[%s1532 + $0x10] sm:$0xf]
                %1543 = vst [vmem:[%s1533 + $0x10] sm:$0xf] %v1542
                %v1544 = vld [vmem:[%s1532 + $0x14] sm:$0xf]
                %1545 = vst [vmem:[%s1533 + $0x14] sm:$0xf] %v1544
                %v1546 = vld [vmem:[%s1532 + $0x18] sm:$0xf]
                %1547 = vst [vmem:[%s1533 + $0x18] sm:$0xf] %v1546
                %v1548 = vld [vmem:[%s1532 + $0x1c] sm:$0xf]
                %1549 = vst [vmem:[%s1533 + $0x1c] sm:$0xf] %v1548
                %v1550 = vld [vmem:[%s1532 + $0x20] sm:$0xf]
                %1551 = vst [vmem:[%s1533 + $0x20] sm:$0xf] %v1550
                %v1552 = vld [vmem:[%s1532 + $0x24] sm:$0xf]
                %1553 = vst [vmem:[%s1533 + $0x24] sm:$0xf] %v1552
                %v1554 = vld [vmem:[%s1532 + $0x28] sm:$0xf]
                %1555 = vst [vmem:[%s1533 + $0x28] sm:$0xf] %v1554
                %v1556 = vld [vmem:[%s1532 + $0x2c] sm:$0xf]
                %1557 = vst [vmem:[%s1533 + $0x2c] sm:$0xf] %v1556
                %v1558 = vld [vmem:[%s1532 + $0x30] sm:$0xf]
                %1559 = vst [vmem:[%s1533 + $0x30] sm:$0xf] %v1558
                %v1560 = vld [vmem:[%s1532 + $0x34] sm:$0xf]
                %1561 = vst [vmem:[%s1533 + $0x34] sm:$0xf] %v1560
                %v1562 = vld [vmem:[%s1532 + $0x38] sm:$0xf]
                %1563 = vst [vmem:[%s1533 + $0x38] sm:$0xf] %v1562
                %v1564 = vld [vmem:[%s1532 + $0x3c] sm:$0xf]
                %1565 = vst [vmem:[%s1533 + $0x3c] sm:$0xf] %v1564
                %v1566 = vld [vmem:[%s1532 + $0x40] sm:$0xf]
                %1567 = vst [vmem:[%s1533 + $0x80] sm:$0xf] %v1566
                %v1568 = vld [vmem:[%s1532 + $0x44] sm:$0xf]
                %1569 = vst [vmem:[%s1533 + $0x84] sm:$0xf] %v1568
                %v1570 = vld [vmem:[%s1532 + $0x48] sm:$0xf]
                %1571 = vst [vmem:[%s1533 + $0x88] sm:$0xf] %v1570
                %v1572 = vld [vmem:[%s1532 + $0x4c] sm:$0xf]
                %1573 = vst [vmem:[%s1533 + $0x8c] sm:$0xf] %v1572
                %v1574 = vld [vmem:[%s1532 + $0x50] sm:$0xf]
                %1575 = vst [vmem:[%s1533 + $0x90] sm:$0xf] %v1574
                %v1576 = vld [vmem:[%s1532 + $0x54] sm:$0xf]
                %1577 = vst [vmem:[%s1533 + $0x94] sm:$0xf] %v1576
                %v1578 = vld [vmem:[%s1532 + $0x58] sm:$0xf]
                %1579 = vst [vmem:[%s1533 + $0x98] sm:$0xf] %v1578
                %v1580 = vld [vmem:[%s1532 + $0x5c] sm:$0xf]
                %1581 = vst [vmem:[%s1533 + $0x9c] sm:$0xf] %v1580
                %v1582 = vld [vmem:[%s1532 + $0x60] sm:$0xf]
                %1583 = vst [vmem:[%s1533 + $0xa0] sm:$0xf] %v1582
                %v1584 = vld [vmem:[%s1532 + $0x64] sm:$0xf]
                %1585 = vst [vmem:[%s1533 + $0xa4] sm:$0xf] %v1584
                %v1586 = vld [vmem:[%s1532 + $0x68] sm:$0xf]
                %1587 = vst [vmem:[%s1533 + $0xa8] sm:$0xf] %v1586
                %v1588 = vld [vmem:[%s1532 + $0x6c] sm:$0xf]
                %1589 = vst [vmem:[%s1533 + $0xac] sm:$0xf] %v1588
                %v1590 = vld [vmem:[%s1532 + $0x70] sm:$0xf]
                %1591 = vst [vmem:[%s1533 + $0xb0] sm:$0xf] %v1590
                %v1592 = vld [vmem:[%s1532 + $0x74] sm:$0xf]
                %1593 = vst [vmem:[%s1533 + $0xb4] sm:$0xf] %v1592
                %v1594 = vld [vmem:[%s1532 + $0x78] sm:$0xf]
                %1595 = vst [vmem:[%s1533 + $0xb8] sm:$0xf] %v1594
                %v1596 = vld [vmem:[%s1532 + $0x7c] sm:$0xf]
                %1597 = vst [vmem:[%s1533 + $0xbc] sm:$0xf] %v1596
              $region143: #{tpu_custom_call.1} parent=137 // loop_footer
                %s1531 = sadd.s32 1, %s1527
              $region144: #{tpu_custom_call.1} parent=137 // loop_footer_branch
                %1526 = sbr.rel target = $region140
              $region145: #{tpu_custom_call.1} parent=137 // loop_exit
                _
            $region138: #{tpu_custom_call.1} parent=129 // pred_fallthru
              _
          $region130: #{tpu_custom_call.1} parent=125 // pred_fallthru
            _
          %1681 = vnop
        $region126: #{tpu_custom_call.1} parent=31 // pred_fallthru
          _
      $region32: #{tpu_custom_call.1} parent=5 // pred_fallthru
        _
      %p1682 = scmp.le.s32.totalorder 2, %s16
      // Predicated region
      $region164: #{tpu_custom_call.1} parent=5 // pred_check
        %p1683 = pneg %p1682
      $region165: #{tpu_custom_call.1} parent=5 // pred_check_branch
        %1685 = sbr.rel (%p1683) target = $region167
      $region166: #{tpu_custom_call.1} parent=5 // pred_region
        %s1686 = ssub.s32 %s16, 2
        // Predicated region
        $region168: #{tpu_custom_call.1} parent=166 // pred_check
          %p1687 = pneg %p129
        $region169: #{tpu_custom_call.1} parent=166 // pred_check_branch
          %1689 = sbr.rel (%p1687) target = $region171
        $region170: #{tpu_custom_call.1} parent=166 // pred_region
          %s1690 = sand.u32 %s114, 1
          %s1691 = sand.u32 %s114, 1
          %s1692 = smul.addr %s1691, 128
          %s1693 = scalar_lea.vmem [#allocation6], %s1692
        $region171: #{tpu_custom_call.1} parent=166 // pred_fallthru
          _
        // Predicated region
        $region172: #{tpu_custom_call.1} parent=166 // pred_check
          %p1694 = pneg %p157
        $region173: #{tpu_custom_call.1} parent=166 // pred_check_branch
          %1696 = sbr.rel (%p1694) target = $region175
        $region174: #{tpu_custom_call.1} parent=166 // pred_region
          %s1697 = sand.u32 %s142, 1
          %s1698 = sand.u32 %s142, 1
          %s1699 = smul.addr %s1698, 128
          %s1700 = scalar_lea.vmem [#allocation7], %s1699
        $region175: #{tpu_custom_call.1} parent=166 // pred_fallthru
          _
        // Predicated region
        $region176: #{tpu_custom_call.1} parent=166 // pred_check
          %p1701 = pneg %p185
        $region177: #{tpu_custom_call.1} parent=166 // pred_check_branch
          %1703 = sbr.rel (%p1701) target = $region179
        $region178: #{tpu_custom_call.1} parent=166 // pred_region
          %s1704 = sand.u32 %s170, 1
          %s1705 = sand.u32 %s170, 1
          %s1706 = smul.addr %s1705, 128
          %s1707 = scalar_lea.vmem [#allocation8], %s1706
        $region179: #{tpu_custom_call.1} parent=166 // pred_fallthru
          _
      $region167: #{tpu_custom_call.1} parent=5 // pred_fallthru
        _
    $region6: #{tpu_custom_call.1} parent=1 // loop_footer
      %s20 = sadd.s32 1, %s16
    $region7: #{tpu_custom_call.1} parent=1 // loop_footer_branch
      %15 = sbr.rel target = $region3
    $region8: #{tpu_custom_call.1} parent=1 // loop_exit
      _
    %1708 = vsyncpa [#allocation3], 1
    %s1709 = scalar_lea.sflag [#allocation3], 1
    %1710 = vsyncpa %s1709, 1
    %1711 = vsyncpa [#allocation5], 1

</llo_original>
